<compile_context>
chip_gen: v7x
topology: tpu7x:2x2x1
jax: 0.10.0
libtpu: 0.0.40
codegen_flags: <defaults>
</compile_context>

<pallas_src>
import functools

import jax
import jax.numpy as jnp
from jax.experimental import pallas as pl
from jax.experimental.pallas import tpu as pltpu


# ----------------------------------------------------------------------------
# Fused ACFM kernel: one grid step == one image; everything stays in VMEM.
# ----------------------------------------------------------------------------
def _acfm_kernel(H, W, C,
                 x_ref, y_ref, m3_ref, wc_ref, bc_ref,
                 law1_ref, lab1_ref, law2_ref, lab2_ref,
                 gaw1_ref, gab1_ref, gaw2_ref, gab2_ref,
                 gmw1_ref, gmb1_ref, gmw2_ref, gmb2_ref,
                 k7_ref, o_ref):
    HW = H * W
    PAD = 128                       # lane-tile aligned zero halo for the 3x3 conv
    f32 = jnp.float32

    # -------- conv_x / conv_mask_x / conv_y / conv_mask_y: ONE matmul --------
    # Both images stacked on sublanes; per 3x3 tap: static lane slice of the
    # zero-padded slab * precomputed halo mask.  All concats are tile-aligned.
    xy = jnp.concatenate([x_ref[0], y_ref[0]], axis=0)            # (2C, HW)
    big = jnp.concatenate(
        [jnp.zeros((2 * C, PAD), f32), xy, jnp.zeros((2 * C, PAD), f32)],
        axis=1)                                                    # (2C, HW+2*PAD)

    pieces = []
    for di in (-1, 0, 1):
        for dj in (-1, 0, 1):
            s = PAD + di * W + dj
            piece = big[:, s:s + HW]                               # static slice
            if di or dj:
                t = (di + 1) * 3 + (dj + 1)
                piece = piece * m3_ref[t:t + 1, :]                 # halo mask
            pieces.append(piece)
    patches = jnp.concatenate(pieces, axis=0)                      # (18C, HW)

    conv = jnp.dot(wc_ref[...], patches, preferred_element_type=f32)
    conv = jnp.maximum(conv + bc_ref[...], 0.0)                    # BN + ReLU
    xc = conv[0:C, :]                                              # conv_x (C, HW)
    yc = conv[C:2 * C, :]                                          # conv_y (C, HW)
    gates = jax.nn.sigmoid(conv[2 * C:2 * C + 2, :])               # sig(mask_x/y)
    z = xc * gates[0:1, :] + yc * gates[1:2, :]                    # xo + yo

    # -------- MSCA_2.local_att: per-pixel 1x1 bottleneck (BN folded) ---------
    h1 = jnp.maximum(
        jnp.dot(law1_ref[...], z, preferred_element_type=f32) + lab1_ref[...],
        0.0)                                                       # (Cr, HW)
    xl = (jnp.dot(law2_ref[...], h1, preferred_element_type=f32)
          + lab2_ref[...])                                         # (C, HW)

    # -------- GAP_att / GMP_att: global spatial pools -> bottlenecks ---------
    gap = jnp.sum(z, axis=1, keepdims=True) * (1.0 / HW)           # (C, 1)
    gh = jnp.maximum(
        jnp.dot(gaw1_ref[...], gap, preferred_element_type=f32) + gab1_ref[...],
        0.0)
    g_out = (jnp.dot(gaw2_ref[...], gh, preferred_element_type=f32)
             + gab2_ref[...])                                      # (C, 1)

    gmp = jnp.max(z, axis=1, keepdims=True)                        # (C, 1)
    mh = jnp.maximum(
        jnp.dot(gmw1_ref[...], gmp, preferred_element_type=f32) + gmb1_ref[...],
        0.0)
    m_out = (jnp.dot(gmw2_ref[...], mh, preferred_element_type=f32)
             + gmb2_ref[...])                                      # (C, 1)

    # -------- spatial path: channel mean/max -> 7x7 conv as ONE matmul -------
    planes = jnp.concatenate(
        [jnp.sum(z, axis=0, keepdims=True) * (1.0 / C),
         jnp.max(z, axis=0, keepdims=True)], axis=1)               # (1, 2*HW)
    sp = jnp.dot(planes, k7_ref[...], preferred_element_type=f32)  # (1, HW)

    # -------- fuse, gate, blend ----------------------------------------------
    wei = jax.nn.sigmoid(xl + g_out + m_out + sp)                  # (C, HW)
    o_ref[0] = xc * wei + yc * (1.0 - wei)


# ----------------------------------------------------------------------------
# Constants derived in the wrapper (no per-step iota / relayout in the kernel).
# ----------------------------------------------------------------------------
def _shift_masks(H, W, radius):
    """Row (di+r)*(2r+1)+(dj+r): 1.0 where output pixel p has a valid source
    pixel (h+di, w+dj) inside the image, else 0.0.  Shape ((2r+1)^2, H*W)."""
    hw = H * W
    hh = jnp.arange(hw, dtype=jnp.int32) // W
    ww = jnp.arange(hw, dtype=jnp.int32) % W
    rows = []
    for di in range(-radius, radius + 1):
        for dj in range(-radius, radius + 1):
            valid = ((hh + di >= 0) & (hh + di < H) &
                     (ww + dj >= 0) & (ww + dj < W))
            rows.append(valid.astype(jnp.float32))
    return jnp.stack(rows, axis=0)


def _conv7_matrix(w7, H, W):
    """Fold Conv2d(2, 1, 7, padding=3, bias=False) into a (2*HW, HW) matrix so
    the spatial-attention conv is one lane-dense matmul:
       sp(1, HW) = [ch_avg | ch_max](1, 2*HW) @ K7(2*HW, HW)."""
    hw = H * W
    masks = _shift_masks(H, W, 3)                                  # (49, HW)
    q = jnp.arange(hw, dtype=jnp.int32)[:, None]                   # source pixel
    p = jnp.arange(hw, dtype=jnp.int32)[None, :]                   # output pixel
    k = jnp.zeros((2, hw, hw), jnp.float32)
    for di in range(-3, 4):
        for dj in range(-3, 4):
            t = (di + 3) * 7 + (dj + 3)
            sel = ((q == p + di * W + dj).astype(jnp.float32)
                   * masks[t][None, :])                            # (HW, HW)
            k = k + jnp.stack([w7[0, di + 3, dj + 3] * sel,
                               w7[1, di + 3, dj + 3] * sel], axis=0)
    return k.reshape(2 * hw, hw)


# ----------------------------------------------------------------------------
# Parameters: BN folded to per-channel affine (inference / running stats).
# ----------------------------------------------------------------------------
def _bn_fold(key, c, eps=1e-5):
    k1, k2, k3, k4 = jax.random.split(key, 4)
    gamma = 1.0 + 0.1 * jax.random.normal(k1, (c,), jnp.float32)
    beta = 0.1 * jax.random.normal(k2, (c,), jnp.float32)
    mean = 0.1 * jax.random.normal(k3, (c,), jnp.float32)
    var = jnp.abs(jax.random.normal(k4, (c,), jnp.float32)) * 0.1 + 1.0
    scale = gamma / jnp.sqrt(var + eps)
    bias = beta - mean * scale
    return scale, bias


def init_params(key, C=8, r=4):
    Cr = max(C // r, 1)
    keys = iter(jax.random.split(key, 32))
    nk = lambda: next(keys)
    p = {}

    def conv3x3_bn(cin, cout):
        # PyTorch Conv2d(cin, cout, 3, bias=False) + BN folded.
        w = 0.1 * jax.random.normal(nk(), (cout, cin, 3, 3), jnp.float32)
        s, b = _bn_fold(nk(), cout)
        w_eff = w * s[:, None, None, None]
        # -> (cout, tap = kh*3+kw, cin): matches the kernel's im2col row order.
        return jnp.transpose(w_eff, (0, 2, 3, 1)).reshape(cout, 9, cin), b

    wxc, bxc = conv3x3_bn(C, C)        # conv_x
    wyc, byc = conv3x3_bn(C, C)        # conv_y
    wxm, bxm = conv3x3_bn(C, 1)        # conv_mask_x
    wym, bym = conv3x3_bn(C, 1)        # conv_mask_y

    # Block-diagonal fused weight: rows [0:C]=conv_x, [C:2C]=conv_y,
    # [2C]=mask_x, [2C+1]=mask_y; patch columns per tap are [x chans | y chans].
    w = jnp.zeros((2 * C + 2, 9, 2 * C), jnp.float32)
    w = w.at[0:C, :, 0:C].set(wxc)
    w = w.at[C:2 * C, :, C:2 * C].set(wyc)
    w = w.at[2 * C, :, 0:C].set(wxm[0])
    w = w.at[2 * C + 1, :, C:2 * C].set(wym[0])
    p["w_conv"] = w.reshape(2 * C + 2, 18 * C)
    p["b_conv"] = jnp.concatenate([bxc, byc, bxm, bym]).reshape(2 * C + 2, 1)

    # MSCA_2 bottlenecks (local / GAP / GMP): 1x1 conv WITH bias + BN folded.
    for pref in ("la", "ga", "gm"):
        w1 = 0.1 * jax.random.normal(nk(), (Cr, C), jnp.float32)
        b1 = 0.1 * jax.random.normal(nk(), (Cr,), jnp.float32)
        s1, t1 = _bn_fold(nk(), Cr)
        w2 = 0.1 * jax.random.normal(nk(), (C, Cr), jnp.float32)
        b2 = 0.1 * jax.random.normal(nk(), (C,), jnp.float32)
        s2, t2 = _bn_fold(nk(), C)
        p[pref + "_w1"] = w1 * s1[:, None]
        p[pref + "_b1"] = (b1 * s1 + t1).reshape(Cr, 1)
        p[pref + "_w2"] = w2 * s2[:, None]
        p[pref + "_b2"] = (b2 * s2 + t2).reshape(C, 1)

    # conv7: Conv2d(2, 1, 7, padding=3, bias=False).
    p["w7"] = 0.1 * jax.random.normal(nk(), (2, 7, 7), jnp.float32)
    return p


# ----------------------------------------------------------------------------
# ACFM.forward (NCHW in / NCHW out, like the PyTorch module).
# ----------------------------------------------------------------------------
def _full_spec(arr):
    n = arr.ndim
    return pl.BlockSpec(tuple(arr.shape), lambda b, _n=n: (0,) * _n)


def acfm_forward(params, x_nchw, y_nchw):
    # TODO(synk): cus_sample 2x-upsample branch (taken only when x/y spatial
    # sizes differ) is not implemented; inputs must share spatial shape.
    if x_nchw.shape != y_nchw.shape:
        raise ValueError("ACFM Pallas kernel requires x.shape == y.shape")
    B, C, H, W = x_nchw.shape
    HW = H * W

    x = x_nchw.reshape(B, C, HW)              # NCHW -> (B, C, HW): free reshape
    y = y_nchw.reshape(B, C, HW)
    mask3 = _shift_masks(H, W, 1)             # (9, HW) halo masks for 3x3 conv
    k7 = _conv7_matrix(params["w7"], H, W)    # (2*HW, HW) folded 7x7 conv

    dense = (mask3, params["w_conv"], params["b_conv"],
             params["la_w1"], params["la_b1"], params["la_w2"], params["la_b2"],
             params["ga_w1"], params["ga_b1"], params["ga_w2"], params["ga_b2"],
             params["gm_w1"], params["gm_b1"], params["gm_w2"], params["gm_b2"],
             k7)
    xy_spec = pl.BlockSpec((1, C, HW), lambda b: (b, 0, 0))
    in_specs = [xy_spec, xy_spec] + [_full_spec(a) for a in dense]

    out = pl.pallas_call(
        functools.partial(_acfm_kernel, H, W, C),
        out_shape=jax.ShapeDtypeStruct((B, C, HW), jnp.float32),
        grid_spec=pltpu.PrefetchScalarGridSpec(
            num_scalar_prefetch=0,
            grid=(B,),
            in_specs=in_specs,
            out_specs=pl.BlockSpec((1, C, HW), lambda b: (b, 0, 0)),
        ),
        compiler_params=pltpu.CompilerParams(
            dimension_semantics=("parallel",),
            vmem_limit_bytes=32 * 1024 * 1024),
    )(x, y, *dense)

    return out.reshape(B, C, H, W)


if __name__ == "__main__":
    key = jax.random.PRNGKey(0)
    kp, kx, ky = jax.random.split(key, 3)

    B, C, H, W = 2, 8, 16, 16            # C divisible by r=4; H*W = 256 lanes
    params = init_params(kp, C=C, r=4)
    x = jax.random.normal(kx, (B, C, H, W), jnp.float32)
    y = jax.random.normal(ky, (B, C, H, W), jnp.float32)

    fwd = jax.jit(functools.partial(acfm_forward, params))
    out = fwd(x, y)
    jax.block_until_ready(out)
    assert out.shape == (B, C, H, W) and out.dtype == jnp.float32
    assert bool(jnp.isfinite(out).all())
    print("KERNEL_OK")
</pallas_src>

<mosaic_0001>
module attributes {stable_mosaic.version = 11 : i64} {
  func.func @_acfm_kernel(%arg0: i32, %arg1: memref<1x8x256xf32, #tpu.memory_space<vmem>>, %arg2: memref<1x8x256xf32, #tpu.memory_space<vmem>>, %arg3: memref<9x256xf32, #tpu.memory_space<vmem>>, %arg4: memref<18x144xf32, #tpu.memory_space<vmem>>, %arg5: memref<18x1xf32, #tpu.memory_space<vmem>>, %arg6: memref<2x8xf32, #tpu.memory_space<vmem>>, %arg7: memref<2x1xf32, #tpu.memory_space<vmem>>, %arg8: memref<8x2xf32, #tpu.memory_space<vmem>>, %arg9: memref<8x1xf32, #tpu.memory_space<vmem>>, %arg10: memref<2x8xf32, #tpu.memory_space<vmem>>, %arg11: memref<2x1xf32, #tpu.memory_space<vmem>>, %arg12: memref<8x2xf32, #tpu.memory_space<vmem>>, %arg13: memref<8x1xf32, #tpu.memory_space<vmem>>, %arg14: memref<2x8xf32, #tpu.memory_space<vmem>>, %arg15: memref<2x1xf32, #tpu.memory_space<vmem>>, %arg16: memref<8x2xf32, #tpu.memory_space<vmem>>, %arg17: memref<8x1xf32, #tpu.memory_space<vmem>>, %arg18: memref<512x256xf32, #tpu.memory_space<vmem>>, %arg19: memref<1x8x256xf32, #tpu.memory_space<vmem>>) attributes {dimension_semantics = [#tpu.dimension_semantics<parallel>], iteration_bounds = array<i64: 2>, scalar_prefetch = 0 : i64, scratch_operands = 0 : i64, tpu.core_type = #tpu.core_type<tc>, window_params = [{transform_indices = @transform_0, window_bounds = array<i64: 1, 8, 256>}, {transform_indices = @transform_1, window_bounds = array<i64: 1, 8, 256>}, {pipeline_mode = #tpu.pipeline_mode<synchronous>, transform_indices = @transform_2, window_bounds = array<i64: 9, 256>}, {pipeline_mode = #tpu.pipeline_mode<synchronous>, transform_indices = @transform_3, window_bounds = array<i64: 18, 144>}, {pipeline_mode = #tpu.pipeline_mode<synchronous>, transform_indices = @transform_4, window_bounds = array<i64: 18, 1>}, {pipeline_mode = #tpu.pipeline_mode<synchronous>, transform_indices = @transform_5, window_bounds = array<i64: 2, 8>}, {pipeline_mode = #tpu.pipeline_mode<synchronous>, transform_indices = @transform_6, window_bounds = array<i64: 2, 1>}, {pipeline_mode = #tpu.pipeline_mode<synchronous>, transform_indices = @transform_7, window_bounds = array<i64: 8, 2>}, {pipeline_mode = #tpu.pipeline_mode<synchronous>, transform_indices = @transform_8, window_bounds = array<i64: 8, 1>}, {pipeline_mode = #tpu.pipeline_mode<synchronous>, transform_indices = @transform_9, window_bounds = array<i64: 2, 8>}, {pipeline_mode = #tpu.pipeline_mode<synchronous>, transform_indices = @transform_10, window_bounds = array<i64: 2, 1>}, {pipeline_mode = #tpu.pipeline_mode<synchronous>, transform_indices = @transform_11, window_bounds = array<i64: 8, 2>}, {pipeline_mode = #tpu.pipeline_mode<synchronous>, transform_indices = @transform_12, window_bounds = array<i64: 8, 1>}, {pipeline_mode = #tpu.pipeline_mode<synchronous>, transform_indices = @transform_13, window_bounds = array<i64: 2, 8>}, {pipeline_mode = #tpu.pipeline_mode<synchronous>, transform_indices = @transform_14, window_bounds = array<i64: 2, 1>}, {pipeline_mode = #tpu.pipeline_mode<synchronous>, transform_indices = @transform_15, window_bounds = array<i64: 8, 2>}, {pipeline_mode = #tpu.pipeline_mode<synchronous>, transform_indices = @transform_16, window_bounds = array<i64: 8, 1>}, {pipeline_mode = #tpu.pipeline_mode<synchronous>, transform_indices = @transform_17, window_bounds = array<i64: 512, 256>}, {transform_indices = @transform_18, window_bounds = array<i64: 1, 8, 256>}]} {
    %c0 = arith.constant 0 : index
    %c0_0 = arith.constant 0 : index
    %c0_1 = arith.constant 0 : index
    %0 = vector.load %arg1[%c0, %c0_0, %c0_1] : memref<1x8x256xf32, #tpu.memory_space<vmem>>, vector<1x8x256xf32>
    %1 = vector.shape_cast %0 : vector<1x8x256xf32> to vector<8x256xf32>
    %c0_2 = arith.constant 0 : index
    %c0_3 = arith.constant 0 : index
    %c0_4 = arith.constant 0 : index
    %2 = vector.load %arg2[%c0_2, %c0_3, %c0_4] : memref<1x8x256xf32, #tpu.memory_space<vmem>>, vector<1x8x256xf32>
    %3 = vector.shape_cast %2 : vector<1x8x256xf32> to vector<8x256xf32>
    %4 = tpu.concatenate %1, %3 in 0 : vector<8x256xf32>, vector<8x256xf32> -> vector<16x256xf32>
    %cst = arith.constant 0.000000e+00 : f32
    %5 = vector.broadcast %cst : f32 to vector<16x128xf32>
    %cst_5 = arith.constant 0.000000e+00 : f32
    %6 = vector.broadcast %cst_5 : f32 to vector<16x128xf32>
    %7 = tpu.concatenate %5, %4, %6 in 1 : vector<16x128xf32>, vector<16x256xf32>, vector<16x128xf32> -> vector<16x512xf32>
    %8 = vector.extract_strided_slice %7 {offsets = [0, 111], sizes = [16, 256], strides = [1, 1]} : vector<16x512xf32> to vector<16x256xf32>
    %c0_6 = arith.constant 0 : index
    %c0_7 = arith.constant 0 : index
    %9 = vector.load %arg3[%c0_6, %c0_7] : memref<9x256xf32, #tpu.memory_space<vmem>>, vector<1x256xf32>
    %10 = vector.broadcast %9 : vector<1x256xf32> to vector<16x256xf32>
    %11 = arith.mulf %8, %10 : vector<16x256xf32>
    %12 = vector.extract_strided_slice %7 {offsets = [0, 112], sizes = [16, 256], strides = [1, 1]} : vector<16x512xf32> to vector<16x256xf32>
    %c1 = arith.constant 1 : index
    %c0_8 = arith.constant 0 : index
    %13 = vector.load %arg3[%c1, %c0_8] : memref<9x256xf32, #tpu.memory_space<vmem>>, vector<1x256xf32>
    %14 = vector.broadcast %13 : vector<1x256xf32> to vector<16x256xf32>
    %15 = arith.mulf %12, %14 : vector<16x256xf32>
    %16 = vector.extract_strided_slice %7 {offsets = [0, 113], sizes = [16, 256], strides = [1, 1]} : vector<16x512xf32> to vector<16x256xf32>
    %c2 = arith.constant 2 : index
    %c0_9 = arith.constant 0 : index
    %17 = vector.load %arg3[%c2, %c0_9] : memref<9x256xf32, #tpu.memory_space<vmem>>, vector<1x256xf32>
    %18 = vector.broadcast %17 : vector<1x256xf32> to vector<16x256xf32>
    %19 = arith.mulf %16, %18 : vector<16x256xf32>
    %20 = vector.extract_strided_slice %7 {offsets = [0, 127], sizes = [16, 256], strides = [1, 1]} : vector<16x512xf32> to vector<16x256xf32>
    %c3 = arith.constant 3 : index
    %c0_10 = arith.constant 0 : index
    %21 = vector.load %arg3[%c3, %c0_10] : memref<9x256xf32, #tpu.memory_space<vmem>>, vector<1x256xf32>
    %22 = vector.broadcast %21 : vector<1x256xf32> to vector<16x256xf32>
    %23 = arith.mulf %20, %22 : vector<16x256xf32>
    %24 = vector.extract_strided_slice %7 {offsets = [0, 128], sizes = [16, 256], strides = [1, 1]} : vector<16x512xf32> to vector<16x256xf32>
    %25 = vector.extract_strided_slice %7 {offsets = [0, 129], sizes = [16, 256], strides = [1, 1]} : vector<16x512xf32> to vector<16x256xf32>
    %c5 = arith.constant 5 : index
    %c0_11 = arith.constant 0 : index
    %26 = vector.load %arg3[%c5, %c0_11] : memref<9x256xf32, #tpu.memory_space<vmem>>, vector<1x256xf32>
    %27 = vector.broadcast %26 : vector<1x256xf32> to vector<16x256xf32>
    %28 = arith.mulf %25, %27 : vector<16x256xf32>
    %29 = vector.extract_strided_slice %7 {offsets = [0, 143], sizes = [16, 256], strides = [1, 1]} : vector<16x512xf32> to vector<16x256xf32>
    %c6 = arith.constant 6 : index
    %c0_12 = arith.constant 0 : index
    %30 = vector.load %arg3[%c6, %c0_12] : memref<9x256xf32, #tpu.memory_space<vmem>>, vector<1x256xf32>
    %31 = vector.broadcast %30 : vector<1x256xf32> to vector<16x256xf32>
    %32 = arith.mulf %29, %31 : vector<16x256xf32>
    %33 = vector.extract_strided_slice %7 {offsets = [0, 144], sizes = [16, 256], strides = [1, 1]} : vector<16x512xf32> to vector<16x256xf32>
    %c7 = arith.constant 7 : index
    %c0_13 = arith.constant 0 : index
    %34 = vector.load %arg3[%c7, %c0_13] : memref<9x256xf32, #tpu.memory_space<vmem>>, vector<1x256xf32>
    %35 = vector.broadcast %34 : vector<1x256xf32> to vector<16x256xf32>
    %36 = arith.mulf %33, %35 : vector<16x256xf32>
    %37 = vector.extract_strided_slice %7 {offsets = [0, 145], sizes = [16, 256], strides = [1, 1]} : vector<16x512xf32> to vector<16x256xf32>
    %c8 = arith.constant 8 : index
    %c0_14 = arith.constant 0 : index
    %38 = vector.load %arg3[%c8, %c0_14] : memref<9x256xf32, #tpu.memory_space<vmem>>, vector<1x256xf32>
    %39 = vector.broadcast %38 : vector<1x256xf32> to vector<16x256xf32>
    %40 = arith.mulf %37, %39 : vector<16x256xf32>
    %41 = tpu.concatenate %11, %15, %19, %23, %24, %28, %32, %36, %40 in 0 : vector<16x256xf32>, vector<16x256xf32>, vector<16x256xf32>, vector<16x256xf32>, vector<16x256xf32>, vector<16x256xf32>, vector<16x256xf32>, vector<16x256xf32>, vector<16x256xf32> -> vector<144x256xf32>
    %c0_15 = arith.constant 0 : index
    %c0_16 = arith.constant 0 : index
    %42 = vector.load %arg4[%c0_15, %c0_16] : memref<18x144xf32, #tpu.memory_space<vmem>>, vector<18x144xf32>
    %cst_17 = arith.constant dense<0.000000e+00> : vector<18x256xf32>
    %43 = tpu.matmul %42, %41, %cst_17 {dimension_numbers = #tpu.dot_dimension_numbers<[1], [0], [0], [1], [0, 0, 1, 1], [], []>} : vector<18x144xf32>, vector<144x256xf32>, vector<18x256xf32> -> vector<18x256xf32>
    %c0_18 = arith.constant 0 : index
    %c0_19 = arith.constant 0 : index
    %44 = vector.load %arg5[%c0_18, %c0_19] : memref<18x1xf32, #tpu.memory_space<vmem>>, vector<18x1xf32>
    %45 = vector.broadcast %44 : vector<18x1xf32> to vector<18x256xf32>
    %46 = arith.addf %43, %45 : vector<18x256xf32>
    %cst_20 = arith.constant 0.000000e+00 : f32
    %47 = vector.broadcast %cst_20 : f32 to vector<18x256xf32>
    %48 = arith.maximumf %46, %47 : vector<18x256xf32>
    %49 = vector.extract_strided_slice %48 {offsets = [0, 0], sizes = [8, 256], strides = [1, 1]} : vector<18x256xf32> to vector<8x256xf32>
    %50 = vector.extract_strided_slice %48 {offsets = [8, 0], sizes = [8, 256], strides = [1, 1]} : vector<18x256xf32> to vector<8x256xf32>
    %51 = vector.extract_strided_slice %48 {offsets = [16, 0], sizes = [2, 256], strides = [1, 1]} : vector<18x256xf32> to vector<2x256xf32>
    %52 = arith.negf %51 : vector<2x256xf32>
    %53 = math.exp %52 : vector<2x256xf32>
    %cst_21 = arith.constant 1.000000e+00 : f32
    %54 = vector.broadcast %cst_21 : f32 to vector<2x256xf32>
    %55 = arith.addf %54, %53 : vector<2x256xf32>
    %56 = arith.divf %54, %55 : vector<2x256xf32>
    %57 = vector.extract_strided_slice %56 {offsets = [0, 0], sizes = [1, 256], strides = [1, 1]} : vector<2x256xf32> to vector<1x256xf32>
    %58 = vector.broadcast %57 : vector<1x256xf32> to vector<8x256xf32>
    %59 = arith.mulf %49, %58 : vector<8x256xf32>
    %60 = vector.extract_strided_slice %56 {offsets = [1, 0], sizes = [1, 256], strides = [1, 1]} : vector<2x256xf32> to vector<1x256xf32>
    %61 = vector.broadcast %60 : vector<1x256xf32> to vector<8x256xf32>
    %62 = arith.mulf %50, %61 : vector<8x256xf32>
    %63 = arith.addf %59, %62 : vector<8x256xf32>
    %c0_22 = arith.constant 0 : index
    %c0_23 = arith.constant 0 : index
    %64 = vector.load %arg6[%c0_22, %c0_23] : memref<2x8xf32, #tpu.memory_space<vmem>>, vector<2x8xf32>
    %cst_24 = arith.constant dense<0.000000e+00> : vector<2x256xf32>
    %65 = tpu.matmul %64, %63, %cst_24 {dimension_numbers = #tpu.dot_dimension_numbers<[1], [0], [0], [1], [0, 0, 1, 1], [], []>} : vector<2x8xf32>, vector<8x256xf32>, vector<2x256xf32> -> vector<2x256xf32>
    %c0_25 = arith.constant 0 : index
    %c0_26 = arith.constant 0 : index
    %66 = vector.load %arg7[%c0_25, %c0_26] : memref<2x1xf32, #tpu.memory_space<vmem>>, vector<2x1xf32>
    %67 = vector.broadcast %66 : vector<2x1xf32> to vector<2x256xf32>
    %68 = arith.addf %65, %67 : vector<2x256xf32>
    %cst_27 = arith.constant 0.000000e+00 : f32
    %69 = vector.broadcast %cst_27 : f32 to vector<2x256xf32>
    %70 = arith.maximumf %68, %69 : vector<2x256xf32>
    %c0_28 = arith.constant 0 : index
    %c0_29 = arith.constant 0 : index
    %71 = vector.load %arg8[%c0_28, %c0_29] : memref<8x2xf32, #tpu.memory_space<vmem>>, vector<8x2xf32>
    %cst_30 = arith.constant dense<0.000000e+00> : vector<8x256xf32>
    %72 = tpu.matmul %71, %70, %cst_30 {dimension_numbers = #tpu.dot_dimension_numbers<[1], [0], [0], [1], [0, 0, 1, 1], [], []>} : vector<8x2xf32>, vector<2x256xf32>, vector<8x256xf32> -> vector<8x256xf32>
    %c0_31 = arith.constant 0 : index
    %c0_32 = arith.constant 0 : index
    %73 = vector.load %arg9[%c0_31, %c0_32] : memref<8x1xf32, #tpu.memory_space<vmem>>, vector<8x1xf32>
    %74 = vector.broadcast %73 : vector<8x1xf32> to vector<8x256xf32>
    %75 = arith.addf %72, %74 : vector<8x256xf32>
    %cst_33 = arith.constant dense<0.000000e+00> : vector<8xf32>
    %76 = vector.multi_reduction <add>, %63, %cst_33 [1] : vector<8x256xf32> to vector<8xf32>
    %77 = vector.shape_cast %76 : vector<8xf32> to vector<8x1xf32>
    %cst_34 = arith.constant 3.906250e-03 : f32
    %78 = vector.broadcast %cst_34 : f32 to vector<8x1xf32>
    %79 = arith.mulf %77, %78 : vector<8x1xf32>
    %c0_35 = arith.constant 0 : index
    %c0_36 = arith.constant 0 : index
    %80 = vector.load %arg10[%c0_35, %c0_36] : memref<2x8xf32, #tpu.memory_space<vmem>>, vector<2x8xf32>
    %cst_37 = arith.constant dense<0.000000e+00> : vector<2x1xf32>
    %81 = tpu.matmul %80, %79, %cst_37 {dimension_numbers = #tpu.dot_dimension_numbers<[1], [0], [0], [1], [0, 0, 1, 1], [], []>} : vector<2x8xf32>, vector<8x1xf32>, vector<2x1xf32> -> vector<2x1xf32>
    %c0_38 = arith.constant 0 : index
    %c0_39 = arith.constant 0 : index
    %82 = vector.load %arg11[%c0_38, %c0_39] : memref<2x1xf32, #tpu.memory_space<vmem>>, vector<2x1xf32>
    %83 = arith.addf %81, %82 : vector<2x1xf32>
    %cst_40 = arith.constant 0.000000e+00 : f32
    %84 = vector.broadcast %cst_40 : f32 to vector<2x1xf32>
    %85 = arith.maximumf %83, %84 : vector<2x1xf32>
    %c0_41 = arith.constant 0 : index
    %c0_42 = arith.constant 0 : index
    %86 = vector.load %arg12[%c0_41, %c0_42] : memref<8x2xf32, #tpu.memory_space<vmem>>, vector<8x2xf32>
    %cst_43 = arith.constant dense<0.000000e+00> : vector<8x1xf32>
    %87 = tpu.matmul %86, %85, %cst_43 {dimension_numbers = #tpu.dot_dimension_numbers<[1], [0], [0], [1], [0, 0, 1, 1], [], []>} : vector<8x2xf32>, vector<2x1xf32>, vector<8x1xf32> -> vector<8x1xf32>
    %c0_44 = arith.constant 0 : index
    %c0_45 = arith.constant 0 : index
    %88 = vector.load %arg13[%c0_44, %c0_45] : memref<8x1xf32, #tpu.memory_space<vmem>>, vector<8x1xf32>
    %89 = arith.addf %87, %88 : vector<8x1xf32>
    %cst_46 = arith.constant dense<0xFF800000> : vector<8xf32>
    %90 = vector.multi_reduction <maximumf>, %63, %cst_46 [1] : vector<8x256xf32> to vector<8xf32>
    %91 = vector.shape_cast %90 : vector<8xf32> to vector<8x1xf32>
    %c0_47 = arith.constant 0 : index
    %c0_48 = arith.constant 0 : index
    %92 = vector.load %arg14[%c0_47, %c0_48] : memref<2x8xf32, #tpu.memory_space<vmem>>, vector<2x8xf32>
    %cst_49 = arith.constant dense<0.000000e+00> : vector<2x1xf32>
    %93 = tpu.matmul %92, %91, %cst_49 {dimension_numbers = #tpu.dot_dimension_numbers<[1], [0], [0], [1], [0, 0, 1, 1], [], []>} : vector<2x8xf32>, vector<8x1xf32>, vector<2x1xf32> -> vector<2x1xf32>
    %c0_50 = arith.constant 0 : index
    %c0_51 = arith.constant 0 : index
    %94 = vector.load %arg15[%c0_50, %c0_51] : memref<2x1xf32, #tpu.memory_space<vmem>>, vector<2x1xf32>
    %95 = arith.addf %93, %94 : vector<2x1xf32>
    %cst_52 = arith.constant 0.000000e+00 : f32
    %96 = vector.broadcast %cst_52 : f32 to vector<2x1xf32>
    %97 = arith.maximumf %95, %96 : vector<2x1xf32>
    %c0_53 = arith.constant 0 : index
    %c0_54 = arith.constant 0 : index
    %98 = vector.load %arg16[%c0_53, %c0_54] : memref<8x2xf32, #tpu.memory_space<vmem>>, vector<8x2xf32>
    %cst_55 = arith.constant dense<0.000000e+00> : vector<8x1xf32>
    %99 = tpu.matmul %98, %97, %cst_55 {dimension_numbers = #tpu.dot_dimension_numbers<[1], [0], [0], [1], [0, 0, 1, 1], [], []>} : vector<8x2xf32>, vector<2x1xf32>, vector<8x1xf32> -> vector<8x1xf32>
    %c0_56 = arith.constant 0 : index
    %c0_57 = arith.constant 0 : index
    %100 = vector.load %arg17[%c0_56, %c0_57] : memref<8x1xf32, #tpu.memory_space<vmem>>, vector<8x1xf32>
    %101 = arith.addf %99, %100 : vector<8x1xf32>
    %cst_58 = arith.constant dense<0.000000e+00> : vector<256xf32>
    %102 = vector.multi_reduction <add>, %63, %cst_58 [0] : vector<8x256xf32> to vector<256xf32>
    %103 = vector.shape_cast %102 : vector<256xf32> to vector<1x256xf32>
    %cst_59 = arith.constant 1.250000e-01 : f32
    %104 = vector.broadcast %cst_59 : f32 to vector<1x256xf32>
    %105 = arith.mulf %103, %104 : vector<1x256xf32>
    %cst_60 = arith.constant dense<0xFF800000> : vector<256xf32>
    %106 = vector.multi_reduction <maximumf>, %63, %cst_60 [0] : vector<8x256xf32> to vector<256xf32>
    %107 = vector.shape_cast %106 : vector<256xf32> to vector<1x256xf32>
    %108 = tpu.concatenate %105, %107 in 1 : vector<1x256xf32>, vector<1x256xf32> -> vector<1x512xf32>
    %c0_61 = arith.constant 0 : index
    %c0_62 = arith.constant 0 : index
    %109 = vector.load %arg18[%c0_61, %c0_62] : memref<512x256xf32, #tpu.memory_space<vmem>>, vector<512x256xf32>
    %cst_63 = arith.constant dense<0.000000e+00> : vector<1x256xf32>
    %110 = tpu.matmul %108, %109, %cst_63 {dimension_numbers = #tpu.dot_dimension_numbers<[1], [0], [0], [1], [0, 0, 1, 1], [], []>} : vector<1x512xf32>, vector<512x256xf32>, vector<1x256xf32> -> vector<1x256xf32>
    %111 = vector.broadcast %89 : vector<8x1xf32> to vector<8x256xf32>
    %112 = arith.addf %75, %111 : vector<8x256xf32>
    %113 = vector.broadcast %101 : vector<8x1xf32> to vector<8x256xf32>
    %114 = arith.addf %112, %113 : vector<8x256xf32>
    %115 = vector.broadcast %110 : vector<1x256xf32> to vector<8x256xf32>
    %116 = arith.addf %114, %115 : vector<8x256xf32>
    %117 = arith.negf %116 : vector<8x256xf32>
    %118 = math.exp %117 : vector<8x256xf32>
    %cst_64 = arith.constant 1.000000e+00 : f32
    %119 = vector.broadcast %cst_64 : f32 to vector<8x256xf32>
    %120 = arith.addf %119, %118 : vector<8x256xf32>
    %121 = arith.divf %119, %120 : vector<8x256xf32>
    %122 = arith.mulf %49, %121 : vector<8x256xf32>
    %cst_65 = arith.constant 1.000000e+00 : f32
    %123 = vector.broadcast %cst_65 : f32 to vector<8x256xf32>
    %124 = arith.subf %123, %121 : vector<8x256xf32>
    %125 = arith.mulf %50, %124 : vector<8x256xf32>
    %126 = arith.addf %122, %125 : vector<8x256xf32>
    %c0_66 = arith.constant 0 : index
    %c0_67 = arith.constant 0 : index
    %c0_68 = arith.constant 0 : index
    %127 = vector.load %arg19[%c0_66, %c0_67, %c0_68] : memref<1x8x256xf32, #tpu.memory_space<vmem>>, vector<1x8x256xf32>
    %128 = vector.shape_cast %127 : vector<1x8x256xf32> to vector<8x256xf32>
    %129 = vector.shape_cast %126 : vector<8x256xf32> to vector<1x8x256xf32>
    tpu.vector_store %arg19[%c0_66, %c0_67, %c0_68], %129 {strides = array<i32>} : memref<1x8x256xf32, #tpu.memory_space<vmem>>, vector<1x8x256xf32>,
    return
  }
  func.func @transform_0(%arg0: i32) -> (i32, i32, i32) {
    %c0_i32 = arith.constant 0 : i32
    %c0_i32_0 = arith.constant 0 : i32
    %c0_i32_1 = arith.constant 0 : i32
    return %arg0, %c0_i32, %c0_i32_0 : i32, i32, i32
  }
  func.func @transform_1(%arg0: i32) -> (i32, i32, i32) {
    %c0_i32 = arith.constant 0 : i32
    %c0_i32_0 = arith.constant 0 : i32
    %c0_i32_1 = arith.constant 0 : i32
    return %arg0, %c0_i32, %c0_i32_0 : i32, i32, i32
  }
  func.func @transform_2(%arg0: i32) -> (i32, i32) {
    %c0_i32 = arith.constant 0 : i32
    %c0_i32_0 = arith.constant 0 : i32
    %c0_i32_1 = arith.constant 0 : i32
    return %c0_i32, %c0_i32_0 : i32, i32
  }
  func.func @transform_3(%arg0: i32) -> (i32, i32) {
    %c0_i32 = arith.constant 0 : i32
    %c0_i32_0 = arith.constant 0 : i32
    %c0_i32_1 = arith.constant 0 : i32
    return %c0_i32, %c0_i32_0 : i32, i32
  }
  func.func @transform_4(%arg0: i32) -> (i32, i32) {
    %c0_i32 = arith.constant 0 : i32
    %c0_i32_0 = arith.constant 0 : i32
    %c0_i32_1 = arith.constant 0 : i32
    return %c0_i32, %c0_i32_0 : i32, i32
  }
  func.func @transform_5(%arg0: i32) -> (i32, i32) {
    %c0_i32 = arith.constant 0 : i32
    %c0_i32_0 = arith.constant 0 : i32
    %c0_i32_1 = arith.constant 0 : i32
    return %c0_i32, %c0_i32_0 : i32, i32
  }
  func.func @transform_6(%arg0: i32) -> (i32, i32) {
    %c0_i32 = arith.constant 0 : i32
    %c0_i32_0 = arith.constant 0 : i32
    %c0_i32_1 = arith.constant 0 : i32
    return %c0_i32, %c0_i32_0 : i32, i32
  }
  func.func @transform_7(%arg0: i32) -> (i32, i32) {
    %c0_i32 = arith.constant 0 : i32
    %c0_i32_0 = arith.constant 0 : i32
    %c0_i32_1 = arith.constant 0 : i32
    return %c0_i32, %c0_i32_0 : i32, i32
  }
  func.func @transform_8(%arg0: i32) -> (i32, i32) {
    %c0_i32 = arith.constant 0 : i32
    %c0_i32_0 = arith.constant 0 : i32
    %c0_i32_1 = arith.constant 0 : i32
    return %c0_i32, %c0_i32_0 : i32, i32
  }
  func.func @transform_9(%arg0: i32) -> (i32, i32) {
    %c0_i32 = arith.constant 0 : i32
    %c0_i32_0 = arith.constant 0 : i32
    %c0_i32_1 = arith.constant 0 : i32
    return %c0_i32, %c0_i32_0 : i32, i32
  }
  func.func @transform_10(%arg0: i32) -> (i32, i32) {
    %c0_i32 = arith.constant 0 : i32
    %c0_i32_0 = arith.constant 0 : i32
    %c0_i32_1 = arith.constant 0 : i32
    return %c0_i32, %c0_i32_0 : i32, i32
  }
  func.func @transform_11(%arg0: i32) -> (i32, i32) {
    %c0_i32 = arith.constant 0 : i32
    %c0_i32_0 = arith.constant 0 : i32
    %c0_i32_1 = arith.constant 0 : i32
    return %c0_i32, %c0_i32_0 : i32, i32
  }
  func.func @transform_12(%arg0: i32) -> (i32, i32) {
    %c0_i32 = arith.constant 0 : i32
    %c0_i32_0 = arith.constant 0 : i32
    %c0_i32_1 = arith.constant 0 : i32
    return %c0_i32, %c0_i32_0 : i32, i32
  }
  func.func @transform_13(%arg0: i32) -> (i32, i32) {
    %c0_i32 = arith.constant 0 : i32
    %c0_i32_0 = arith.constant 0 : i32
    %c0_i32_1 = arith.constant 0 : i32
    return %c0_i32, %c0_i32_0 : i32, i32
  }
  func.func @transform_14(%arg0: i32) -> (i32, i32) {
    %c0_i32 = arith.constant 0 : i32
    %c0_i32_0 = arith.constant 0 : i32
    %c0_i32_1 = arith.constant 0 : i32
    return %c0_i32, %c0_i32_0 : i32, i32
  }
  func.func @transform_15(%arg0: i32) -> (i32, i32) {
    %c0_i32 = arith.constant 0 : i32
    %c0_i32_0 = arith.constant 0 : i32
    %c0_i32_1 = arith.constant 0 : i32
    return %c0_i32, %c0_i32_0 : i32, i32
  }
  func.func @transform_16(%arg0: i32) -> (i32, i32) {
    %c0_i32 = arith.constant 0 : i32
    %c0_i32_0 = arith.constant 0 : i32
    %c0_i32_1 = arith.constant 0 : i32
    return %c0_i32, %c0_i32_0 : i32, i32
  }
  func.func @transform_17(%arg0: i32) -> (i32, i32) {
    %c0_i32 = arith.constant 0 : i32
    %c0_i32_0 = arith.constant 0 : i32
    %c0_i32_1 = arith.constant 0 : i32
    return %c0_i32, %c0_i32_0 : i32, i32
  }
  func.func @transform_18(%arg0: i32) -> (i32, i32, i32) {
    %c0_i32 = arith.constant 0 : i32
    %c0_i32_0 = arith.constant 0 : i32
    %c0_i32_1 = arith.constant 0 : i32
    return %arg0, %c0_i32, %c0_i32_0 : i32, i32, i32
  }
}

</mosaic_0001>

<llo_original>
// kernel: acfm_forward.1
$region0: #{acfm_forward.1}
  #allocation0 [shape = 'u32[]', space=smem, size = 0x4, offset = 0x4, fixed_abs, tag = 'smem constant byte address 0x4 - core index']
  #allocation1 [shape = 'u32[144,128]{1,0:T(1,128)}', space=vmem, size = 0x12000, scoped, tag = 'internal scratch']
  %s0 = inlined_call_operand.vmem [shape: f32[2,8,256], index: 0, kind: input, shape index: {}]
  %s1 = inlined_call_operand.vmem [shape: f32[2,8,256], index: 1, kind: input, shape index: {}]
  %s2 = inlined_call_operand.vmem [shape: f32[9,256], index: 2, kind: input, shape index: {}]
  %s3 = inlined_call_operand.vmem [shape: f32[18,144], index: 3, kind: input, shape index: {}]
  %s4 = inlined_call_operand.vmem [shape: f32[18,1], index: 4, kind: input, shape index: {}]
  %s5 = inlined_call_operand.vmem [shape: f32[2,8], index: 5, kind: input, shape index: {}]
  %s6 = inlined_call_operand.vmem [shape: f32[2,1], index: 6, kind: input, shape index: {}]
  %s7 = inlined_call_operand.vmem [shape: f32[8,2], index: 7, kind: input, shape index: {}]
  %s8 = inlined_call_operand.vmem [shape: f32[8,1], index: 8, kind: input, shape index: {}]
  %s9 = inlined_call_operand.vmem [shape: f32[2,8], index: 9, kind: input, shape index: {}]
  %s10 = inlined_call_operand.vmem [shape: f32[2,1], index: 10, kind: input, shape index: {}]
  %s11 = inlined_call_operand.vmem [shape: f32[8,2], index: 11, kind: input, shape index: {}]
  %s12 = inlined_call_operand.vmem [shape: f32[8,1], index: 12, kind: input, shape index: {}]
  %s13 = inlined_call_operand.vmem [shape: f32[2,8], index: 13, kind: input, shape index: {}]
  %s14 = inlined_call_operand.vmem [shape: f32[2,1], index: 14, kind: input, shape index: {}]
  %s15 = inlined_call_operand.vmem [shape: f32[8,2], index: 15, kind: input, shape index: {}]
  %s16 = inlined_call_operand.vmem [shape: f32[8,1], index: 16, kind: input, shape index: {}]
  %s17 = inlined_call_operand.vmem [shape: f32[512,256], index: 17, kind: input, shape index: {}]
  %s18 = inlined_call_operand.vmem [shape: f32[2,8,256], index: 18, kind: output, shape index: {}]
  %s19 = sld [smem:[#allocation0]]
  $region105: #{acfm_forward.1} parent=0
    _
  %s21 = ssub.s32 1, %s19
  %s22 = scalar_select 0, %s21, %s19
  loop: start=0, step=1, limit=4
  $region2: #{acfm_forward.1} parent=0 // loop_pre_header
    _
  $region3: #{acfm_forward.1} parent=0 // loop_header
    %s24 = sphi 0, %s28
    %p25 = scmp.ge.s32.totalorder %s24, 4
    %s34 = sphi 0, %s36
    %s37 = sphi 0, %s34
    %s38 = sphi 0, %s37
    %s54 = sphi 0, %s38
    %s60 = sphi 0, %s62
    %s63 = sphi 0, %s60
    %s64 = sphi 0, %s63
    %s80 = sphi 0, %s64
    %s84 = sphi 0, %s84
    %s86 = sphi 0, %s84
    %s87 = sphi 0, %s86
    %s101 = sphi 0, %s87
    %s105 = sphi 0, %s105
    %s107 = sphi 0, %s105
    %s108 = sphi 0, %s107
    %s122 = sphi 0, %s108
    %s126 = sphi 0, %s126
    %s128 = sphi 0, %s126
    %s129 = sphi 0, %s128
    %s143 = sphi 0, %s129
    %s147 = sphi 0, %s147
    %s149 = sphi 0, %s147
    %s150 = sphi 0, %s149
    %s164 = sphi 0, %s150
    %s168 = sphi 0, %s168
    %s170 = sphi 0, %s168
    %s171 = sphi 0, %s170
    %s185 = sphi 0, %s171
    %s189 = sphi 0, %s189
    %s191 = sphi 0, %s189
    %s192 = sphi 0, %s191
    %s206 = sphi 0, %s192
    %s210 = sphi 0, %s210
    %s212 = sphi 0, %s210
    %s213 = sphi 0, %s212
    %s227 = sphi 0, %s213
    %s231 = sphi 0, %s231
    %s233 = sphi 0, %s231
    %s234 = sphi 0, %s233
    %s248 = sphi 0, %s234
    %s252 = sphi 0, %s252
    %s254 = sphi 0, %s252
    %s255 = sphi 0, %s254
    %s269 = sphi 0, %s255
    %s273 = sphi 0, %s273
    %s275 = sphi 0, %s273
    %s276 = sphi 0, %s275
    %s290 = sphi 0, %s276
    %s294 = sphi 0, %s294
    %s296 = sphi 0, %s294
    %s297 = sphi 0, %s296
    %s311 = sphi 0, %s297
    %s315 = sphi 0, %s315
    %s317 = sphi 0, %s315
    %s318 = sphi 0, %s317
    %s332 = sphi 0, %s318
    %s336 = sphi 0, %s336
    %s338 = sphi 0, %s336
    %s339 = sphi 0, %s338
    %s353 = sphi 0, %s339
    %s357 = sphi 0, %s357
    %s359 = sphi 0, %s357
    %s360 = sphi 0, %s359
    %s374 = sphi 0, %s360
    %s378 = sphi 0, %s378
    %s380 = sphi 0, %s378
    %s381 = sphi 0, %s380
    %s395 = sphi 0, %s381
    %s399 = sphi 0, %s399
    %s401 = sphi 0, %s399
    %s402 = sphi 0, %s401
    %s416 = sphi 0, %s402
    %s422 = sphi 0, %s424
    %s425 = sphi 0, %s422
    %s426 = sphi 0, %s425
    %s442 = sphi 0, %s426
  $region4: #{acfm_forward.1} parent=0 // loop_header_branch
    %27 = sbr.rel (%p25) target = $region8
  $region5: #{acfm_forward.1} parent=0 // loop_body
    %s29 = ssub.s32 %s24, 1
    %s30 = ssub.s32 %s24, 2
    %s31 = sadd.s32 %s24, 1
    %s32 = ssub.s32 %s24, %s31
    %p33 = scmp.eq.s32.totalorder %s32, 0
    %s35 = sadd.s32 %s34, 1
    %s36 = scalar_select %p33, %s34, %s35
    %p39 = pneg %p33
    %p40 = scmp.eq.s32.totalorder %s24, 1
    %p41 = por %p39, %p40
    %p42 = scmp.ne.s32.totalorder %s34, %s37
    %p43 = scmp.eq.s32.totalorder %s24, 0
    %p44 = por %p42, %p43
    %p45 = scmp.ne.s32.totalorder %s34, %s37
    %p46 = scmp.eq.s32.totalorder %s29, 1
    %p47 = por %p45, %p46
    %p48 = scmp.ne.s32.totalorder %s37, %s38
    %p49 = scmp.eq.s32.totalorder %s29, 0
    %p50 = por %p48, %p49
    %p51 = scmp.ne.s32.totalorder %s37, %s38
    %p52 = scmp.eq.s32.totalorder %s30, 1
    %p53 = por %p51, %p52
    %p55 = scmp.ne.s32.totalorder %s38, %s54
    %p56 = scmp.eq.s32.totalorder %s30, 0
    %p57 = por %p55, %p56
    %s58 = ssub.s32 %s24, %s31
    %p59 = scmp.eq.s32.totalorder %s58, 0
    %s61 = sadd.s32 %s60, 1
    %s62 = scalar_select %p59, %s60, %s61
    %p65 = pneg %p59
    %p66 = scmp.eq.s32.totalorder %s24, 1
    %p67 = por %p65, %p66
    %p68 = scmp.ne.s32.totalorder %s60, %s63
    %p69 = scmp.eq.s32.totalorder %s24, 0
    %p70 = por %p68, %p69
    %p71 = scmp.ne.s32.totalorder %s60, %s63
    %p72 = scmp.eq.s32.totalorder %s29, 1
    %p73 = por %p71, %p72
    %p74 = scmp.ne.s32.totalorder %s63, %s64
    %p75 = scmp.eq.s32.totalorder %s29, 0
    %p76 = por %p74, %p75
    %p77 = scmp.ne.s32.totalorder %s63, %s64
    %p78 = scmp.eq.s32.totalorder %s30, 1
    %p79 = por %p77, %p78
    %p81 = scmp.ne.s32.totalorder %s64, %s80
    %p82 = scmp.eq.s32.totalorder %s30, 0
    %p83 = por %p81, %p82
    %s85 = sadd.s32 %s84, 1
    %p88 = scmp.eq.s32.totalorder %s24, 1
    %p89 = scmp.ne.s32.totalorder %s84, %s86
    %p90 = scmp.eq.s32.totalorder %s24, 0
    %p91 = por %p89, %p90
    %p92 = scmp.ne.s32.totalorder %s84, %s86
    %p93 = scmp.eq.s32.totalorder %s29, 1
    %p94 = por %p92, %p93
    %p95 = scmp.ne.s32.totalorder %s86, %s87
    %p96 = scmp.eq.s32.totalorder %s29, 0
    %p97 = por %p95, %p96
    %p98 = scmp.ne.s32.totalorder %s86, %s87
    %p99 = scmp.eq.s32.totalorder %s30, 1
    %p100 = por %p98, %p99
    %p102 = scmp.ne.s32.totalorder %s87, %s101
    %p103 = scmp.eq.s32.totalorder %s30, 0
    %p104 = por %p102, %p103
    %s106 = sadd.s32 %s105, 1
    %p109 = scmp.eq.s32.totalorder %s24, 1
    %p110 = scmp.ne.s32.totalorder %s105, %s107
    %p111 = scmp.eq.s32.totalorder %s24, 0
    %p112 = por %p110, %p111
    %p113 = scmp.ne.s32.totalorder %s105, %s107
    %p114 = scmp.eq.s32.totalorder %s29, 1
    %p115 = por %p113, %p114
    %p116 = scmp.ne.s32.totalorder %s107, %s108
    %p117 = scmp.eq.s32.totalorder %s29, 0
    %p118 = por %p116, %p117
    %p119 = scmp.ne.s32.totalorder %s107, %s108
    %p120 = scmp.eq.s32.totalorder %s30, 1
    %p121 = por %p119, %p120
    %p123 = scmp.ne.s32.totalorder %s108, %s122
    %p124 = scmp.eq.s32.totalorder %s30, 0
    %p125 = por %p123, %p124
    %s127 = sadd.s32 %s126, 1
    %p130 = scmp.eq.s32.totalorder %s24, 1
    %p131 = scmp.ne.s32.totalorder %s126, %s128
    %p132 = scmp.eq.s32.totalorder %s24, 0
    %p133 = por %p131, %p132
    %p134 = scmp.ne.s32.totalorder %s126, %s128
    %p135 = scmp.eq.s32.totalorder %s29, 1
    %p136 = por %p134, %p135
    %p137 = scmp.ne.s32.totalorder %s128, %s129
    %p138 = scmp.eq.s32.totalorder %s29, 0
    %p139 = por %p137, %p138
    %p140 = scmp.ne.s32.totalorder %s128, %s129
    %p141 = scmp.eq.s32.totalorder %s30, 1
    %p142 = por %p140, %p141
    %p144 = scmp.ne.s32.totalorder %s129, %s143
    %p145 = scmp.eq.s32.totalorder %s30, 0
    %p146 = por %p144, %p145
    %s148 = sadd.s32 %s147, 1
    %p151 = scmp.eq.s32.totalorder %s24, 1
    %p152 = scmp.ne.s32.totalorder %s147, %s149
    %p153 = scmp.eq.s32.totalorder %s24, 0
    %p154 = por %p152, %p153
    %p155 = scmp.ne.s32.totalorder %s147, %s149
    %p156 = scmp.eq.s32.totalorder %s29, 1
    %p157 = por %p155, %p156
    %p158 = scmp.ne.s32.totalorder %s149, %s150
    %p159 = scmp.eq.s32.totalorder %s29, 0
    %p160 = por %p158, %p159
    %p161 = scmp.ne.s32.totalorder %s149, %s150
    %p162 = scmp.eq.s32.totalorder %s30, 1
    %p163 = por %p161, %p162
    %p165 = scmp.ne.s32.totalorder %s150, %s164
    %p166 = scmp.eq.s32.totalorder %s30, 0
    %p167 = por %p165, %p166
    %s169 = sadd.s32 %s168, 1
    %p172 = scmp.eq.s32.totalorder %s24, 1
    %p173 = scmp.ne.s32.totalorder %s168, %s170
    %p174 = scmp.eq.s32.totalorder %s24, 0
    %p175 = por %p173, %p174
    %p176 = scmp.ne.s32.totalorder %s168, %s170
    %p177 = scmp.eq.s32.totalorder %s29, 1
    %p178 = por %p176, %p177
    %p179 = scmp.ne.s32.totalorder %s170, %s171
    %p180 = scmp.eq.s32.totalorder %s29, 0
    %p181 = por %p179, %p180
    %p182 = scmp.ne.s32.totalorder %s170, %s171
    %p183 = scmp.eq.s32.totalorder %s30, 1
    %p184 = por %p182, %p183
    %p186 = scmp.ne.s32.totalorder %s171, %s185
    %p187 = scmp.eq.s32.totalorder %s30, 0
    %p188 = por %p186, %p187
    %s190 = sadd.s32 %s189, 1
    %p193 = scmp.eq.s32.totalorder %s24, 1
    %p194 = scmp.ne.s32.totalorder %s189, %s191
    %p195 = scmp.eq.s32.totalorder %s24, 0
    %p196 = por %p194, %p195
    %p197 = scmp.ne.s32.totalorder %s189, %s191
    %p198 = scmp.eq.s32.totalorder %s29, 1
    %p199 = por %p197, %p198
    %p200 = scmp.ne.s32.totalorder %s191, %s192
    %p201 = scmp.eq.s32.totalorder %s29, 0
    %p202 = por %p200, %p201
    %p203 = scmp.ne.s32.totalorder %s191, %s192
    %p204 = scmp.eq.s32.totalorder %s30, 1
    %p205 = por %p203, %p204
    %p207 = scmp.ne.s32.totalorder %s192, %s206
    %p208 = scmp.eq.s32.totalorder %s30, 0
    %p209 = por %p207, %p208
    %s211 = sadd.s32 %s210, 1
    %p214 = scmp.eq.s32.totalorder %s24, 1
    %p215 = scmp.ne.s32.totalorder %s210, %s212
    %p216 = scmp.eq.s32.totalorder %s24, 0
    %p217 = por %p215, %p216
    %p218 = scmp.ne.s32.totalorder %s210, %s212
    %p219 = scmp.eq.s32.totalorder %s29, 1
    %p220 = por %p218, %p219
    %p221 = scmp.ne.s32.totalorder %s212, %s213
    %p222 = scmp.eq.s32.totalorder %s29, 0
    %p223 = por %p221, %p222
    %p224 = scmp.ne.s32.totalorder %s212, %s213
    %p225 = scmp.eq.s32.totalorder %s30, 1
    %p226 = por %p224, %p225
    %p228 = scmp.ne.s32.totalorder %s213, %s227
    %p229 = scmp.eq.s32.totalorder %s30, 0
    %p230 = por %p228, %p229
    %s232 = sadd.s32 %s231, 1
    %p235 = scmp.eq.s32.totalorder %s24, 1
    %p236 = scmp.ne.s32.totalorder %s231, %s233
    %p237 = scmp.eq.s32.totalorder %s24, 0
    %p238 = por %p236, %p237
    %p239 = scmp.ne.s32.totalorder %s231, %s233
    %p240 = scmp.eq.s32.totalorder %s29, 1
    %p241 = por %p239, %p240
    %p242 = scmp.ne.s32.totalorder %s233, %s234
    %p243 = scmp.eq.s32.totalorder %s29, 0
    %p244 = por %p242, %p243
    %p245 = scmp.ne.s32.totalorder %s233, %s234
    %p246 = scmp.eq.s32.totalorder %s30, 1
    %p247 = por %p245, %p246
    %p249 = scmp.ne.s32.totalorder %s234, %s248
    %p250 = scmp.eq.s32.totalorder %s30, 0
    %p251 = por %p249, %p250
    %s253 = sadd.s32 %s252, 1
    %p256 = scmp.eq.s32.totalorder %s24, 1
    %p257 = scmp.ne.s32.totalorder %s252, %s254
    %p258 = scmp.eq.s32.totalorder %s24, 0
    %p259 = por %p257, %p258
    %p260 = scmp.ne.s32.totalorder %s252, %s254
    %p261 = scmp.eq.s32.totalorder %s29, 1
    %p262 = por %p260, %p261
    %p263 = scmp.ne.s32.totalorder %s254, %s255
    %p264 = scmp.eq.s32.totalorder %s29, 0
    %p265 = por %p263, %p264
    %p266 = scmp.ne.s32.totalorder %s254, %s255
    %p267 = scmp.eq.s32.totalorder %s30, 1
    %p268 = por %p266, %p267
    %p270 = scmp.ne.s32.totalorder %s255, %s269
    %p271 = scmp.eq.s32.totalorder %s30, 0
    %p272 = por %p270, %p271
    %s274 = sadd.s32 %s273, 1
    %p277 = scmp.eq.s32.totalorder %s24, 1
    %p278 = scmp.ne.s32.totalorder %s273, %s275
    %p279 = scmp.eq.s32.totalorder %s24, 0
    %p280 = por %p278, %p279
    %p281 = scmp.ne.s32.totalorder %s273, %s275
    %p282 = scmp.eq.s32.totalorder %s29, 1
    %p283 = por %p281, %p282
    %p284 = scmp.ne.s32.totalorder %s275, %s276
    %p285 = scmp.eq.s32.totalorder %s29, 0
    %p286 = por %p284, %p285
    %p287 = scmp.ne.s32.totalorder %s275, %s276
    %p288 = scmp.eq.s32.totalorder %s30, 1
    %p289 = por %p287, %p288
    %p291 = scmp.ne.s32.totalorder %s276, %s290
    %p292 = scmp.eq.s32.totalorder %s30, 0
    %p293 = por %p291, %p292
    %s295 = sadd.s32 %s294, 1
    %p298 = scmp.eq.s32.totalorder %s24, 1
    %p299 = scmp.ne.s32.totalorder %s294, %s296
    %p300 = scmp.eq.s32.totalorder %s24, 0
    %p301 = por %p299, %p300
    %p302 = scmp.ne.s32.totalorder %s294, %s296
    %p303 = scmp.eq.s32.totalorder %s29, 1
    %p304 = por %p302, %p303
    %p305 = scmp.ne.s32.totalorder %s296, %s297
    %p306 = scmp.eq.s32.totalorder %s29, 0
    %p307 = por %p305, %p306
    %p308 = scmp.ne.s32.totalorder %s296, %s297
    %p309 = scmp.eq.s32.totalorder %s30, 1
    %p310 = por %p308, %p309
    %p312 = scmp.ne.s32.totalorder %s297, %s311
    %p313 = scmp.eq.s32.totalorder %s30, 0
    %p314 = por %p312, %p313
    %s316 = sadd.s32 %s315, 1
    %p319 = scmp.eq.s32.totalorder %s24, 1
    %p320 = scmp.ne.s32.totalorder %s315, %s317
    %p321 = scmp.eq.s32.totalorder %s24, 0
    %p322 = por %p320, %p321
    %p323 = scmp.ne.s32.totalorder %s315, %s317
    %p324 = scmp.eq.s32.totalorder %s29, 1
    %p325 = por %p323, %p324
    %p326 = scmp.ne.s32.totalorder %s317, %s318
    %p327 = scmp.eq.s32.totalorder %s29, 0
    %p328 = por %p326, %p327
    %p329 = scmp.ne.s32.totalorder %s317, %s318
    %p330 = scmp.eq.s32.totalorder %s30, 1
    %p331 = por %p329, %p330
    %p333 = scmp.ne.s32.totalorder %s318, %s332
    %p334 = scmp.eq.s32.totalorder %s30, 0
    %p335 = por %p333, %p334
    %s337 = sadd.s32 %s336, 1
    %p340 = scmp.eq.s32.totalorder %s24, 1
    %p341 = scmp.ne.s32.totalorder %s336, %s338
    %p342 = scmp.eq.s32.totalorder %s24, 0
    %p343 = por %p341, %p342
    %p344 = scmp.ne.s32.totalorder %s336, %s338
    %p345 = scmp.eq.s32.totalorder %s29, 1
    %p346 = por %p344, %p345
    %p347 = scmp.ne.s32.totalorder %s338, %s339
    %p348 = scmp.eq.s32.totalorder %s29, 0
    %p349 = por %p347, %p348
    %p350 = scmp.ne.s32.totalorder %s338, %s339
    %p351 = scmp.eq.s32.totalorder %s30, 1
    %p352 = por %p350, %p351
    %p354 = scmp.ne.s32.totalorder %s339, %s353
    %p355 = scmp.eq.s32.totalorder %s30, 0
    %p356 = por %p354, %p355
    %s358 = sadd.s32 %s357, 1
    %p361 = scmp.eq.s32.totalorder %s24, 1
    %p362 = scmp.ne.s32.totalorder %s357, %s359
    %p363 = scmp.eq.s32.totalorder %s24, 0
    %p364 = por %p362, %p363
    %p365 = scmp.ne.s32.totalorder %s357, %s359
    %p366 = scmp.eq.s32.totalorder %s29, 1
    %p367 = por %p365, %p366
    %p368 = scmp.ne.s32.totalorder %s359, %s360
    %p369 = scmp.eq.s32.totalorder %s29, 0
    %p370 = por %p368, %p369
    %p371 = scmp.ne.s32.totalorder %s359, %s360
    %p372 = scmp.eq.s32.totalorder %s30, 1
    %p373 = por %p371, %p372
    %p375 = scmp.ne.s32.totalorder %s360, %s374
    %p376 = scmp.eq.s32.totalorder %s30, 0
    %p377 = por %p375, %p376
    %s379 = sadd.s32 %s378, 1
    %p382 = scmp.eq.s32.totalorder %s24, 1
    %p383 = scmp.ne.s32.totalorder %s378, %s380
    %p384 = scmp.eq.s32.totalorder %s24, 0
    %p385 = por %p383, %p384
    %p386 = scmp.ne.s32.totalorder %s378, %s380
    %p387 = scmp.eq.s32.totalorder %s29, 1
    %p388 = por %p386, %p387
    %p389 = scmp.ne.s32.totalorder %s380, %s381
    %p390 = scmp.eq.s32.totalorder %s29, 0
    %p391 = por %p389, %p390
    %p392 = scmp.ne.s32.totalorder %s380, %s381
    %p393 = scmp.eq.s32.totalorder %s30, 1
    %p394 = por %p392, %p393
    %p396 = scmp.ne.s32.totalorder %s381, %s395
    %p397 = scmp.eq.s32.totalorder %s30, 0
    %p398 = por %p396, %p397
    %s400 = sadd.s32 %s399, 1
    %p403 = scmp.eq.s32.totalorder %s24, 1
    %p404 = scmp.ne.s32.totalorder %s399, %s401
    %p405 = scmp.eq.s32.totalorder %s24, 0
    %p406 = por %p404, %p405
    %p407 = scmp.ne.s32.totalorder %s399, %s401
    %p408 = scmp.eq.s32.totalorder %s29, 1
    %p409 = por %p407, %p408
    %p410 = scmp.ne.s32.totalorder %s401, %s402
    %p411 = scmp.eq.s32.totalorder %s29, 0
    %p412 = por %p410, %p411
    %p413 = scmp.ne.s32.totalorder %s401, %s402
    %p414 = scmp.eq.s32.totalorder %s30, 1
    %p415 = por %p413, %p414
    %p417 = scmp.ne.s32.totalorder %s402, %s416
    %p418 = scmp.eq.s32.totalorder %s30, 0
    %p419 = por %p417, %p418
    %s420 = ssub.s32 %s24, %s31
    %p421 = scmp.eq.s32.totalorder %s420, 0
    %s423 = sadd.s32 %s422, 1
    %s424 = scalar_select %p421, %s422, %s423
    %p427 = pneg %p421
    %p428 = scmp.eq.s32.totalorder %s24, 1
    %p429 = por %p427, %p428
    %p430 = scmp.ne.s32.totalorder %s422, %s425
    %p431 = scmp.eq.s32.totalorder %s24, 0
    %p432 = por %p430, %p431
    %p433 = scmp.ne.s32.totalorder %s422, %s425
    %p434 = scmp.eq.s32.totalorder %s29, 1
    %p435 = por %p433, %p434
    %p436 = scmp.ne.s32.totalorder %s425, %s426
    %p437 = scmp.eq.s32.totalorder %s29, 0
    %p438 = por %p436, %p437
    %p439 = scmp.ne.s32.totalorder %s425, %s426
    %p440 = scmp.eq.s32.totalorder %s30, 1
    %p441 = por %p439, %p440
    %p443 = scmp.ne.s32.totalorder %s426, %s442
    %p444 = scmp.eq.s32.totalorder %s30, 0
    %p445 = por %p443, %p444
    %p446 = scmp.le.s32.totalorder 1, %s24
    %p447 = scmp.lt.s32.totalorder %s24, 3
    %p448 = pnand %p446, %p447
    %p449 = pneg %p448
    // Predicated region
    $region9: #{acfm_forward.1} parent=5 // pred_check
      _
    $region10: #{acfm_forward.1} parent=5 // pred_check_branch
      %451 = sbr.rel (%p448) target = $region12
    $region11: #{acfm_forward.1} parent=5 // pred_region
      %s452 = ssub.s32 %s24, 1
      // Predicated region
      $region13: #{acfm_forward.1} parent=11 // pred_check
        %p453 = pneg %p97
      $region14: #{acfm_forward.1} parent=11 // pred_check_branch
        %455 = sbr.rel (%p453) target = $region16
      $region15: #{acfm_forward.1} parent=11 // pred_region
        _
      $region16: #{acfm_forward.1} parent=11 // pred_fallthru
        _
      // Predicated region
      $region17: #{acfm_forward.1} parent=11 // pred_check
        %p456 = pneg %p118
      $region18: #{acfm_forward.1} parent=11 // pred_check_branch
        %458 = sbr.rel (%p456) target = $region20
      $region19: #{acfm_forward.1} parent=11 // pred_region
        _
      $region20: #{acfm_forward.1} parent=11 // pred_fallthru
        _
      // Predicated region
      $region21: #{acfm_forward.1} parent=11 // pred_check
        %p459 = pneg %p139
      $region22: #{acfm_forward.1} parent=11 // pred_check_branch
        %461 = sbr.rel (%p459) target = $region24
      $region23: #{acfm_forward.1} parent=11 // pred_region
        _
      $region24: #{acfm_forward.1} parent=11 // pred_fallthru
        _
      // Predicated region
      $region25: #{acfm_forward.1} parent=11 // pred_check
        %p462 = pneg %p160
      $region26: #{acfm_forward.1} parent=11 // pred_check_branch
        %464 = sbr.rel (%p462) target = $region28
      $region27: #{acfm_forward.1} parent=11 // pred_region
        _
      $region28: #{acfm_forward.1} parent=11 // pred_fallthru
        _
      // Predicated region
      $region29: #{acfm_forward.1} parent=11 // pred_check
        %p465 = pneg %p181
      $region30: #{acfm_forward.1} parent=11 // pred_check_branch
        %467 = sbr.rel (%p465) target = $region32
      $region31: #{acfm_forward.1} parent=11 // pred_region
        _
      $region32: #{acfm_forward.1} parent=11 // pred_fallthru
        _
      // Predicated region
      $region33: #{acfm_forward.1} parent=11 // pred_check
        %p468 = pneg %p202
      $region34: #{acfm_forward.1} parent=11 // pred_check_branch
        %470 = sbr.rel (%p468) target = $region36
      $region35: #{acfm_forward.1} parent=11 // pred_region
        _
      $region36: #{acfm_forward.1} parent=11 // pred_fallthru
        _
      // Predicated region
      $region37: #{acfm_forward.1} parent=11 // pred_check
        %p471 = pneg %p223
      $region38: #{acfm_forward.1} parent=11 // pred_check_branch
        %473 = sbr.rel (%p471) target = $region40
      $region39: #{acfm_forward.1} parent=11 // pred_region
        _
      $region40: #{acfm_forward.1} parent=11 // pred_fallthru
        _
      // Predicated region
      $region41: #{acfm_forward.1} parent=11 // pred_check
        %p474 = pneg %p244
      $region42: #{acfm_forward.1} parent=11 // pred_check_branch
        %476 = sbr.rel (%p474) target = $region44
      $region43: #{acfm_forward.1} parent=11 // pred_region
        _
      $region44: #{acfm_forward.1} parent=11 // pred_fallthru
        _
      // Predicated region
      $region45: #{acfm_forward.1} parent=11 // pred_check
        %p477 = pneg %p265
      $region46: #{acfm_forward.1} parent=11 // pred_check_branch
        %479 = sbr.rel (%p477) target = $region48
      $region47: #{acfm_forward.1} parent=11 // pred_region
        _
      $region48: #{acfm_forward.1} parent=11 // pred_fallthru
        _
      // Predicated region
      $region49: #{acfm_forward.1} parent=11 // pred_check
        %p480 = pneg %p286
      $region50: #{acfm_forward.1} parent=11 // pred_check_branch
        %482 = sbr.rel (%p480) target = $region52
      $region51: #{acfm_forward.1} parent=11 // pred_region
        _
      $region52: #{acfm_forward.1} parent=11 // pred_fallthru
        _
      // Predicated region
      $region53: #{acfm_forward.1} parent=11 // pred_check
        %p483 = pneg %p307
      $region54: #{acfm_forward.1} parent=11 // pred_check_branch
        %485 = sbr.rel (%p483) target = $region56
      $region55: #{acfm_forward.1} parent=11 // pred_region
        _
      $region56: #{acfm_forward.1} parent=11 // pred_fallthru
        _
      // Predicated region
      $region57: #{acfm_forward.1} parent=11 // pred_check
        %p486 = pneg %p328
      $region58: #{acfm_forward.1} parent=11 // pred_check_branch
        %488 = sbr.rel (%p486) target = $region60
      $region59: #{acfm_forward.1} parent=11 // pred_region
        _
      $region60: #{acfm_forward.1} parent=11 // pred_fallthru
        _
      // Predicated region
      $region61: #{acfm_forward.1} parent=11 // pred_check
        %p489 = pneg %p349
      $region62: #{acfm_forward.1} parent=11 // pred_check_branch
        %491 = sbr.rel (%p489) target = $region64
      $region63: #{acfm_forward.1} parent=11 // pred_region
        _
      $region64: #{acfm_forward.1} parent=11 // pred_fallthru
        _
      // Predicated region
      $region65: #{acfm_forward.1} parent=11 // pred_check
        %p492 = pneg %p370
      $region66: #{acfm_forward.1} parent=11 // pred_check_branch
        %494 = sbr.rel (%p492) target = $region68
      $region67: #{acfm_forward.1} parent=11 // pred_region
        _
      $region68: #{acfm_forward.1} parent=11 // pred_fallthru
        _
      // Predicated region
      $region69: #{acfm_forward.1} parent=11 // pred_check
        %p495 = pneg %p391
      $region70: #{acfm_forward.1} parent=11 // pred_check_branch
        %497 = sbr.rel (%p495) target = $region72
      $region71: #{acfm_forward.1} parent=11 // pred_region
        _
      $region72: #{acfm_forward.1} parent=11 // pred_fallthru
        _
      // Predicated region
      $region73: #{acfm_forward.1} parent=11 // pred_check
        %p498 = pneg %p412
      $region74: #{acfm_forward.1} parent=11 // pred_check_branch
        %500 = sbr.rel (%p498) target = $region76
      $region75: #{acfm_forward.1} parent=11 // pred_region
        _
      $region76: #{acfm_forward.1} parent=11 // pred_fallthru
        _
    $region12: #{acfm_forward.1} parent=5 // pred_fallthru
      _
    %p501 = scmp.lt.s32.totalorder %s24, 2
    // Predicated region
    $region77: #{acfm_forward.1} parent=5 // pred_check
      %p502 = pneg %p501
    $region78: #{acfm_forward.1} parent=5 // pred_check_branch
      %504 = sbr.rel (%p502) target = $region80
    $region79: #{acfm_forward.1} parent=5 // pred_region
      // Predicated region
      $region81: #{acfm_forward.1} parent=79 // pred_check
        %p505 = pneg %p44
      $region82: #{acfm_forward.1} parent=79 // pred_check_branch
        %507 = sbr.rel (%p505) target = $region84
      $region83: #{acfm_forward.1} parent=79 // pred_region
        %p508 = scmp.lt.s32.totalorder %s24, 1
        %s509 = scalar_select %p508, %s24, 1
        %s510 = smul.addr %s509, 2
        %s511 = smul.addr %s510, 8
        %s512 = scalar_lea.vmem %s0, %s511
      $region84: #{acfm_forward.1} parent=79 // pred_fallthru
        _
      // Predicated region
      $region85: #{acfm_forward.1} parent=79 // pred_check
        %p513 = pneg %p70
      $region86: #{acfm_forward.1} parent=79 // pred_check_branch
        %515 = sbr.rel (%p513) target = $region88
      $region87: #{acfm_forward.1} parent=79 // pred_region
        %p516 = scmp.lt.s32.totalorder %s24, 1
        %s517 = scalar_select %p516, %s24, 1
        %s518 = smul.addr %s517, 2
        %s519 = smul.addr %s518, 8
        %s520 = scalar_lea.vmem %s1, %s519
      $region88: #{acfm_forward.1} parent=79 // pred_fallthru
        _
    $region80: #{acfm_forward.1} parent=5 // pred_fallthru
      _
    %p521 = scmp.le.s32.totalorder 1, %s24
    %p522 = scmp.lt.s32.totalorder %s24, 3
    %p523 = pnand %p521, %p522
    %p524 = pneg %p523
    // Predicated region
    $region89: #{acfm_forward.1} parent=5 // pred_check
      _
    $region90: #{acfm_forward.1} parent=5 // pred_check_branch
      %526 = sbr.rel (%p523) target = $region92
    $region91: #{acfm_forward.1} parent=5 // pred_region
      %s527 = ssub.s32 %s24, 1
      %p528 = scmp.lt.s32.totalorder %s29, 1
      %s529 = scalar_select %p528, %s29, 1
      %s530 = smul.addr %s529, 2
      %s531 = smul.addr %s530, 8
      %s532 = scalar_lea.vmem %s0, %s531
      %p533 = pneg %p50
      %p534 = pneg %p47
      %p535 = scmp.lt.s32.totalorder %s29, 1
      %s536 = scalar_select %p535, %s29, 1
      %s537 = smul.addr %s536, 2
      %s538 = smul.addr %s537, 8
      %s539 = scalar_lea.vmem %s1, %s538
      %p540 = pneg %p76
      %p541 = pneg %p73
      %p542 = pneg %p97
      %p543 = pneg %p94
      %p544 = pneg %p118
      %p545 = pneg %p115
      %p546 = pneg %p139
      %p547 = pneg %p136
      %p548 = pneg %p160
      %p549 = pneg %p157
      %p550 = pneg %p181
      %p551 = pneg %p178
      %p552 = pneg %p202
      %p553 = pneg %p199
      %p554 = pneg %p223
      %p555 = pneg %p220
      %p556 = pneg %p244
      %p557 = pneg %p241
      %p558 = pneg %p265
      %p559 = pneg %p262
      %p560 = pneg %p286
      %p561 = pneg %p283
      %p562 = pneg %p307
      %p563 = pneg %p304
      %p564 = pneg %p328
      %p565 = pneg %p325
      %p566 = pneg %p349
      %p567 = pneg %p346
      %p568 = pneg %p370
      %p569 = pneg %p367
      %p570 = pneg %p391
      %p571 = pneg %p388
      %p572 = pneg %p412
      %p573 = pneg %p409
      %p574 = pneg %p438
      %p575 = pneg %p435
      %p576 = scmp.lt.s32.totalorder %s29, 1
      %s577 = scalar_select %p576, %s29, 1
      %s578 = smul.addr %s577, 2
      %s579 = smul.addr %s578, 8
      %s580 = scalar_lea.vmem %s18, %s579
      %p581 = scmp.lt.s32.totalorder %s29, 1
      %s582 = scalar_select %p581, %s29, 1
      %s583 = smul.addr %s582, 2
      %s584 = smul.addr %s583, 8
      %s585 = scalar_lea.vmem %s0, %s584
      %p586 = scmp.lt.s32.totalorder %s29, 1
      %s587 = scalar_select %p586, %s29, 1
      %s588 = smul.addr %s587, 2
      %s589 = smul.addr %s588, 8
      %s590 = scalar_lea.vmem %s1, %s589
      %p591 = scmp.lt.s32.totalorder %s29, 1
      %s592 = scalar_select %p591, %s29, 1
      %s593 = smul.addr %s592, 2
      %s594 = smul.addr %s593, 8
      %s595 = scalar_lea.vmem %s18, %s594
      %v596 = vld [vmem:[%s585] sm:$0xff]
      %v597 = vld [vmem:[%s585 + $0x8] sm:$0xff]
      %v598 = vld [vmem:[%s590] sm:$0xff]
      %v599 = vld [vmem:[%s590 + $0x8] sm:$0xff]
      %v600 = vld [vmem:[%s2] ss:$8 sm:$0x3]
      %v602 = vlaneseq
      %v603 = vshrl.u32 %v602, 7
      %v604 = vsub.s32 0, %v603
      %v605 = vrot.slane %v600, %v604
      %v606 = vlaneseq
      %v607 = vshrl.u32 %v606, 7
      %v608 = vsub.s32 1, %v607
      %v609 = vrot.slane %v600, %v608
      %610 = vrot.lane.b32.xlu0 %v605, 111
      %v611 = vpop.permute.xlu0 %610
      %612 = vrot.lane.b32.xlu0 %v609, 111
      %v613 = vpop.permute.xlu0 %612
      %vm614 = vcmask 908288
      %v615 = vsel %vm614, %v611, %v613
      %v619 = vmul.f32 %v611, 0.0
      %v620 = vmul.f32 %v596, %v615
      %v621 = vmul.f32 %v597, %v613
      %v622 = vmul.f32 %v598, %v615
      %v623 = vmul.f32 %v599, %v613
      %s624 = scalar_lea.vmem %s2, 1
      %v625 = vld [vmem:[%s624] ss:$8 sm:$0x3]
      %v627 = vlaneseq
      %v628 = vshrl.u32 %v627, 7
      %v629 = vsub.s32 0, %v628
      %v630 = vrot.slane %v625, %v629
      %v631 = vlaneseq
      %v632 = vshrl.u32 %v631, 7
      %v633 = vsub.s32 1, %v632
      %v634 = vrot.slane %v625, %v633
      %635 = vrot.lane.b32.xlu0 %v630, 112
      %v636 = vpop.permute.xlu0 %635
      %637 = vrot.lane.b32.xlu0 %v634, 112
      %v638 = vpop.permute.xlu0 %637
      %vm639 = vcmask 916480
      %v640 = vsel %vm639, %v636, %v638
      %v644 = vmul.f32 %v636, 0.0
      %v645 = vmul.f32 %v596, %v640
      %v646 = vmul.f32 %v597, %v638
      %v647 = vmul.f32 %v598, %v640
      %v648 = vmul.f32 %v599, %v638
      %s649 = scalar_lea.vmem %s2, 2
      %v650 = vld [vmem:[%s649] ss:$8 sm:$0x3]
      %v652 = vlaneseq
      %v653 = vshrl.u32 %v652, 7
      %v654 = vsub.s32 0, %v653
      %v655 = vrot.slane %v650, %v654
      %v656 = vlaneseq
      %v657 = vshrl.u32 %v656, 7
      %v658 = vsub.s32 1, %v657
      %v659 = vrot.slane %v650, %v658
      %660 = vrot.lane.b32.xlu0 %v655, 113
      %v661 = vpop.permute.xlu0 %660
      %662 = vrot.lane.b32.xlu0 %v659, 113
      %v663 = vpop.permute.xlu0 %662
      %vm664 = vcmask 924672
      %v665 = vsel %vm664, %v661, %v663
      %v669 = vmul.f32 %v661, 0.0
      %v670 = vmul.f32 %v596, %v665
      %v671 = vmul.f32 %v597, %v663
      %v672 = vmul.f32 %v598, %v665
      %v673 = vmul.f32 %v599, %v663
      %s674 = scalar_lea.vmem %s2, 3
      %v675 = vld [vmem:[%s674] ss:$8 sm:$0x3]
      %v677 = vlaneseq
      %v678 = vshrl.u32 %v677, 7
      %v679 = vsub.s32 0, %v678
      %v680 = vrot.slane %v675, %v679
      %v681 = vlaneseq
      %v682 = vshrl.u32 %v681, 7
      %v683 = vsub.s32 1, %v682
      %v684 = vrot.slane %v675, %v683
      %685 = vrot.lane.b32.xlu0 %v680, 127
      %v686 = vpop.permute.xlu0 %685
      %687 = vrot.lane.b32.xlu0 %v684, 127
      %v688 = vpop.permute.xlu0 %687
      %vm689 = vcmask 1039360
      %v690 = vsel %vm689, %v686, %v688
      %v694 = vmul.f32 %v686, 0.0
      %v695 = vmul.f32 %v596, %v690
      %v696 = vmul.f32 %v597, %v688
      %v697 = vmul.f32 %v598, %v690
      %v698 = vmul.f32 %v599, %v688
      %s699 = scalar_lea.vmem %s2, 5
      %v700 = vld [vmem:[%s699] ss:$8 sm:$0x3]
      %v702 = vlaneseq
      %v703 = vshrl.u32 %v702, 7
      %v704 = vsub.s32 0, %v703
      %v705 = vrot.slane %v700, %v704
      %v706 = vlaneseq
      %v707 = vshrl.u32 %v706, 7
      %v708 = vsub.s32 1, %v707
      %v709 = vrot.slane %v700, %v708
      %710 = vrot.lane.b32.xlu0 %v705, 1
      %v711 = vpop.permute.xlu0 %710
      %712 = vrot.lane.b32.xlu0 %v709, 1
      %v713 = vpop.permute.xlu0 %712
      %vm714 = vcmask 7168
      %v715 = vsel %vm714, %v711, %v713
      %v719 = vmul.f32 %v596, %v711
      %v720 = vmul.f32 %v597, %v715
      %v721 = vmul.f32 %v713, 0.0
      %v722 = vmul.f32 %v598, %v711
      %v723 = vmul.f32 %v599, %v715
      %s724 = scalar_lea.vmem %s2, 6
      %v725 = vld [vmem:[%s724] ss:$8 sm:$0x3]
      %v727 = vlaneseq
      %v728 = vshrl.u32 %v727, 7
      %v729 = vsub.s32 0, %v728
      %v730 = vrot.slane %v725, %v729
      %v731 = vlaneseq
      %v732 = vshrl.u32 %v731, 7
      %v733 = vsub.s32 1, %v732
      %v734 = vrot.slane %v725, %v733
      %735 = vrot.lane.b32.xlu0 %v730, 15
      %v736 = vpop.permute.xlu0 %735
      %737 = vrot.lane.b32.xlu0 %v734, 15
      %v738 = vpop.permute.xlu0 %737
      %vm739 = vcmask 121856
      %v740 = vsel %vm739, %v736, %v738
      %v744 = vmul.f32 %v596, %v736
      %v745 = vmul.f32 %v597, %v740
      %v746 = vmul.f32 %v738, 0.0
      %v747 = vmul.f32 %v598, %v736
      %v748 = vmul.f32 %v599, %v740
      %s749 = scalar_lea.vmem %s2, 7
      %v750 = vld [vmem:[%s749] ss:$8 sm:$0x3]
      %v752 = vlaneseq
      %v753 = vshrl.u32 %v752, 7
      %v754 = vsub.s32 0, %v753
      %v755 = vrot.slane %v750, %v754
      %v756 = vlaneseq
      %v757 = vshrl.u32 %v756, 7
      %v758 = vsub.s32 1, %v757
      %v759 = vrot.slane %v750, %v758
      %760 = vrot.lane.b32.xlu0 %v755, 16
      %v761 = vpop.permute.xlu0 %760
      %762 = vrot.lane.b32.xlu0 %v759, 16
      %v763 = vpop.permute.xlu0 %762
      %vm764 = vcmask 130048
      %v765 = vsel %vm764, %v761, %v763
      %v769 = vmul.f32 %v596, %v761
      %v770 = vmul.f32 %v597, %v765
      %v771 = vmul.f32 %v763, 0.0
      %v772 = vmul.f32 %v598, %v761
      %v773 = vmul.f32 %v599, %v765
      %s774 = scalar_lea.vmem %s2, 16
      %v775 = vld [vmem:[%s774] ss:$8 sm:$0x3]
      %v777 = vlaneseq
      %v778 = vshrl.u32 %v777, 7
      %v779 = vsub.s32 0, %v778
      %v780 = vrot.slane %v775, %v779
      %v781 = vlaneseq
      %v782 = vshrl.u32 %v781, 7
      %v783 = vsub.s32 1, %v782
      %v784 = vrot.slane %v775, %v783
      %785 = vrot.lane.b32.xlu0 %v780, 17
      %v786 = vpop.permute.xlu0 %785
      %787 = vrot.lane.b32.xlu0 %v784, 17
      %v788 = vpop.permute.xlu0 %787
      %vm789 = vcmask 138240
      %v790 = vsel %vm789, %v786, %v788
      %v794 = vmul.f32 %v596, %v786
      %v795 = vmul.f32 %v597, %v790
      %v796 = vmul.f32 %v788, 0.0
      %v797 = vmul.f32 %v598, %v786
      %v798 = vmul.f32 %v599, %v790
      %804 = vrot.lane.b32.xlu0 %v644, 127
      %v805 = vpop.permute.xlu0 %804
      %806 = vrot.lane.b32.xlu0 %v645, 127
      %v807 = vpop.permute.xlu0 %806
      %808 = vrot.lane.b32.xlu0 %v646, 127
      %v809 = vpop.permute.xlu0 %808
      %810 = vrot.lane.b32.xlu0 %v647, 127
      %v811 = vpop.permute.xlu0 %810
      %812 = vrot.lane.b32.xlu0 %v648, 127
      %v813 = vpop.permute.xlu0 %812
      %v814 = vsel %vm689, %v805, %v807
      %v815 = vsel %vm689, %v807, %v809
      %v816 = vsel %vm689, %v805, %v811
      %v817 = vsel %vm689, %v811, %v813
      %823 = vrot.lane.b32.xlu0 %v669, 126
      %v824 = vpop.permute.xlu0 %823
      %825 = vrot.lane.b32.xlu0 %v670, 126
      %v826 = vpop.permute.xlu0 %825
      %827 = vrot.lane.b32.xlu0 %v671, 126
      %v828 = vpop.permute.xlu0 %827
      %829 = vrot.lane.b32.xlu0 %v672, 126
      %v830 = vpop.permute.xlu0 %829
      %831 = vrot.lane.b32.xlu0 %v673, 126
      %v832 = vpop.permute.xlu0 %831
      %vm833 = vcmask 1031168
      %v834 = vsel %vm833, %v824, %v826
      %v835 = vsel %vm833, %v826, %v828
      %v836 = vsel %vm833, %v824, %v830
      %v837 = vsel %vm833, %v830, %v832
      %843 = vrot.lane.b32.xlu0 %v694, 112
      %v844 = vpop.permute.xlu0 %843
      %845 = vrot.lane.b32.xlu0 %v695, 112
      %v846 = vpop.permute.xlu0 %845
      %847 = vrot.lane.b32.xlu0 %v696, 112
      %v848 = vpop.permute.xlu0 %847
      %849 = vrot.lane.b32.xlu0 %v697, 112
      %v850 = vpop.permute.xlu0 %849
      %851 = vrot.lane.b32.xlu0 %v698, 112
      %v852 = vpop.permute.xlu0 %851
      %v853 = vsel %vm639, %v844, %v846
      %v854 = vsel %vm639, %v846, %v848
      %v855 = vsel %vm639, %v844, %v850
      %v856 = vsel %vm639, %v850, %v852
      %861 = vrot.lane.b32.xlu0 %v596, 111
      %v862 = vpop.permute.xlu0 %861
      %863 = vrot.lane.b32.xlu0 %v597, 111
      %v864 = vpop.permute.xlu0 %863
      %865 = vrot.lane.b32.xlu0 %v598, 111
      %v866 = vpop.permute.xlu0 %865
      %867 = vrot.lane.b32.xlu0 %v599, 111
      %v868 = vpop.permute.xlu0 %867
      %v869 = vsel %vm614, %v862, %v864
      %v870 = vsel %vm614, %v866, %v868
      %876 = vrot.lane.b32.xlu0 %v719, 110
      %v877 = vpop.permute.xlu0 %876
      %878 = vrot.lane.b32.xlu0 %v720, 110
      %v879 = vpop.permute.xlu0 %878
      %880 = vrot.lane.b32.xlu0 %v721, 110
      %v881 = vpop.permute.xlu0 %880
      %882 = vrot.lane.b32.xlu0 %v722, 110
      %v883 = vpop.permute.xlu0 %882
      %884 = vrot.lane.b32.xlu0 %v723, 110
      %v885 = vpop.permute.xlu0 %884
      %vm886 = vcmask 900096
      %v887 = vsel %vm886, %v877, %v879
      %v888 = vsel %vm886, %v879, %v881
      %v889 = vsel %vm886, %v883, %v885
      %v890 = vsel %vm886, %v885, %v881
      %896 = vrot.lane.b32.xlu0 %v744, 96
      %v897 = vpop.permute.xlu0 %896
      %898 = vrot.lane.b32.xlu0 %v745, 96
      %v899 = vpop.permute.xlu0 %898
      %900 = vrot.lane.b32.xlu0 %v746, 96
      %v901 = vpop.permute.xlu0 %900
      %902 = vrot.lane.b32.xlu0 %v747, 96
      %v903 = vpop.permute.xlu0 %902
      %904 = vrot.lane.b32.xlu0 %v748, 96
      %v905 = vpop.permute.xlu0 %904
      %vm906 = vcmask 785408
      %v907 = vsel %vm906, %v897, %v899
      %v908 = vsel %vm906, %v899, %v901
      %v909 = vsel %vm906, %v903, %v905
      %v910 = vsel %vm906, %v905, %v901
      %916 = vrot.lane.b32.xlu0 %v769, 95
      %v917 = vpop.permute.xlu0 %916
      %918 = vrot.lane.b32.xlu0 %v770, 95
      %v919 = vpop.permute.xlu0 %918
      %920 = vrot.lane.b32.xlu0 %v771, 95
      %v921 = vpop.permute.xlu0 %920
      %922 = vrot.lane.b32.xlu0 %v772, 95
      %v923 = vpop.permute.xlu0 %922
      %924 = vrot.lane.b32.xlu0 %v773, 95
      %v925 = vpop.permute.xlu0 %924
      %vm926 = vcmask 777216
      %v927 = vsel %vm926, %v917, %v919
      %v928 = vsel %vm926, %v919, %v921
      %v929 = vsel %vm926, %v923, %v925
      %v930 = vsel %vm926, %v925, %v921
      %936 = vrot.lane.b32.xlu0 %v794, 94
      %v937 = vpop.permute.xlu0 %936
      %938 = vrot.lane.b32.xlu0 %v795, 94
      %v939 = vpop.permute.xlu0 %938
      %940 = vrot.lane.b32.xlu0 %v796, 94
      %v941 = vpop.permute.xlu0 %940
      %942 = vrot.lane.b32.xlu0 %v797, 94
      %v943 = vpop.permute.xlu0 %942
      %944 = vrot.lane.b32.xlu0 %v798, 94
      %v945 = vpop.permute.xlu0 %944
      %vm946 = vcmask 769024
      %v947 = vsel %vm946, %v937, %v939
      %v948 = vsel %vm946, %v939, %v941
      %v949 = vsel %vm946, %v943, %v945
      %v950 = vsel %vm946, %v945, %v941
      %v951 = vld [vmem:[%s3] sm:$0xff]
      %v952 = vld [vmem:[%s3 + $0x8] sm:$0xff]
      %v953 = vld [vmem:[%s3 + $0x10] sm:$0xff]
      %v954 = vld [vmem:[%s3 + $0x18] sm:$0xff]
      %v955 = vld [vmem:[%s3 + $0x20] sm:$0x3]
      %v956 = vld [vmem:[%s3 + $0x28] sm:$0x3]
      %v957 = vld [vmem:[%s4] sm:$0xff]
      %v958 = vld [vmem:[%s4 + $0x8] sm:$0xff]
      %v959 = vld [vmem:[%s4 + $0x10] sm:$0x3]
      %961 = vset.pattern.permute.xlu0 0
      %962 = vperm.xlu0 %961, %v957
      %v963 = vpop.permute.xlu0 %962
      %966 = vset.pattern.permute.xlu0 0
      %967 = vperm.xlu0 %966, %v958
      %v968 = vpop.permute.xlu0 %967
      %971 = vset.pattern.permute.xlu0 0
      %972 = vperm.xlu0 %971, %v959
      %v973 = vpop.permute.xlu0 %972
      %980 = vrot.lane.b32.xlu0 %v619, 17
      %v981 = vpop.permute.xlu0 %980
      %982 = vrot.lane.b32.xlu0 %v620, 17
      %v983 = vpop.permute.xlu0 %982
      %984 = vrot.lane.b32.xlu0 %v621, 17
      %v985 = vpop.permute.xlu0 %984
      %986 = vrot.lane.b32.xlu0 %v622, 17
      %v987 = vpop.permute.xlu0 %986
      %988 = vrot.lane.b32.xlu0 %v623, 17
      %v989 = vpop.permute.xlu0 %988
      %990 = vrot.lane.b32.xlu0 %v814, 17
      %v991 = vpop.permute.xlu0 %990
      %992 = vrot.lane.b32.xlu0 %v815, 17
      %v993 = vpop.permute.xlu0 %992
      %994 = vrot.lane.b32.xlu0 %v809, 17
      %v995 = vpop.permute.xlu0 %994
      %996 = vrot.lane.b32.xlu0 %v816, 17
      %v997 = vpop.permute.xlu0 %996
      %998 = vrot.lane.b32.xlu0 %v817, 17
      %v999 = vpop.permute.xlu0 %998
      %1000 = vrot.lane.b32.xlu0 %v813, 17
      %v1001 = vpop.permute.xlu0 %1000
      %1002 = vrot.lane.b32.xlu0 %v834, 17
      %v1003 = vpop.permute.xlu0 %1002
      %1004 = vrot.lane.b32.xlu0 %v835, 17
      %v1005 = vpop.permute.xlu0 %1004
      %1006 = vrot.lane.b32.xlu0 %v828, 17
      %v1007 = vpop.permute.xlu0 %1006
      %1008 = vrot.lane.b32.xlu0 %v836, 17
      %v1009 = vpop.permute.xlu0 %1008
      %1010 = vrot.lane.b32.xlu0 %v837, 17
      %v1011 = vpop.permute.xlu0 %1010
      %1012 = vrot.lane.b32.xlu0 %v832, 17
      %v1013 = vpop.permute.xlu0 %1012
      %1014 = vrot.lane.b32.xlu0 %v853, 17
      %v1015 = vpop.permute.xlu0 %1014
      %1016 = vrot.lane.b32.xlu0 %v854, 17
      %v1017 = vpop.permute.xlu0 %1016
      %1018 = vrot.lane.b32.xlu0 %v848, 17
      %v1019 = vpop.permute.xlu0 %1018
      %1020 = vrot.lane.b32.xlu0 %v855, 17
      %v1021 = vpop.permute.xlu0 %1020
      %1022 = vrot.lane.b32.xlu0 %v856, 17
      %v1023 = vpop.permute.xlu0 %1022
      %1024 = vrot.lane.b32.xlu0 %v852, 17
      %v1025 = vpop.permute.xlu0 %1024
      %1026 = vrot.lane.b32.xlu0 %v862, 17
      %v1027 = vpop.permute.xlu0 %1026
      %1028 = vrot.lane.b32.xlu0 %v869, 17
      %v1029 = vpop.permute.xlu0 %1028
      %1030 = vrot.lane.b32.xlu0 %v864, 17
      %v1031 = vpop.permute.xlu0 %1030
      %1032 = vrot.lane.b32.xlu0 %v866, 17
      %v1033 = vpop.permute.xlu0 %1032
      %1034 = vrot.lane.b32.xlu0 %v870, 17
      %v1035 = vpop.permute.xlu0 %1034
      %1036 = vrot.lane.b32.xlu0 %v868, 17
      %v1037 = vpop.permute.xlu0 %1036
      %1038 = vrot.lane.b32.xlu0 %v877, 17
      %v1039 = vpop.permute.xlu0 %1038
      %1040 = vrot.lane.b32.xlu0 %v887, 17
      %v1041 = vpop.permute.xlu0 %1040
      %1042 = vrot.lane.b32.xlu0 %v888, 17
      %v1043 = vpop.permute.xlu0 %1042
      %1044 = vrot.lane.b32.xlu0 %v883, 17
      %v1045 = vpop.permute.xlu0 %1044
      %1046 = vrot.lane.b32.xlu0 %v889, 17
      %v1047 = vpop.permute.xlu0 %1046
      %1048 = vrot.lane.b32.xlu0 %v890, 17
      %v1049 = vpop.permute.xlu0 %1048
      %1050 = vrot.lane.b32.xlu0 %v897, 17
      %v1051 = vpop.permute.xlu0 %1050
      %1052 = vrot.lane.b32.xlu0 %v907, 17
      %v1053 = vpop.permute.xlu0 %1052
      %1054 = vrot.lane.b32.xlu0 %v908, 17
      %v1055 = vpop.permute.xlu0 %1054
      %1056 = vrot.lane.b32.xlu0 %v903, 17
      %v1057 = vpop.permute.xlu0 %1056
      %1058 = vrot.lane.b32.xlu0 %v909, 17
      %v1059 = vpop.permute.xlu0 %1058
      %1060 = vrot.lane.b32.xlu0 %v910, 17
      %v1061 = vpop.permute.xlu0 %1060
      %1062 = vrot.lane.b32.xlu0 %v917, 17
      %v1063 = vpop.permute.xlu0 %1062
      %1064 = vrot.lane.b32.xlu0 %v927, 17
      %v1065 = vpop.permute.xlu0 %1064
      %1066 = vrot.lane.b32.xlu0 %v928, 17
      %v1067 = vpop.permute.xlu0 %1066
      %1068 = vrot.lane.b32.xlu0 %v923, 17
      %v1069 = vpop.permute.xlu0 %1068
      %1070 = vrot.lane.b32.xlu0 %v929, 17
      %v1071 = vpop.permute.xlu0 %1070
      %1072 = vrot.lane.b32.xlu0 %v930, 17
      %v1073 = vpop.permute.xlu0 %1072
      %1074 = vrot.lane.b32.xlu0 %v937, 17
      %v1075 = vpop.permute.xlu0 %1074
      %1076 = vrot.lane.b32.xlu0 %v947, 17
      %v1077 = vpop.permute.xlu0 %1076
      %1078 = vrot.lane.b32.xlu0 %v948, 17
      %v1079 = vpop.permute.xlu0 %1078
      %1080 = vrot.lane.b32.xlu0 %v943, 17
      %v1081 = vpop.permute.xlu0 %1080
      %1082 = vrot.lane.b32.xlu0 %v949, 17
      %v1083 = vpop.permute.xlu0 %1082
      %1084 = vrot.lane.b32.xlu0 %v950, 17
      %v1085 = vpop.permute.xlu0 %1084
      %v1086 = vsel %vm789, %v981, %v983
      %v1087 = vsel %vm789, %v983, %v985
      %v1088 = vsel %vm789, %v981, %v987
      %v1089 = vsel %vm789, %v987, %v989
      %v1090 = vsel %vm789, %v991, %v993
      %v1091 = vsel %vm789, %v993, %v995
      %v1092 = vsel %vm789, %v997, %v999
      %v1093 = vsel %vm789, %v999, %v1001
      %v1094 = vsel %vm789, %v1003, %v1005
      %v1095 = vsel %vm789, %v1005, %v1007
      %v1096 = vsel %vm789, %v1009, %v1011
      %v1097 = vsel %vm789, %v1011, %v1013
      %v1098 = vsel %vm789, %v1015, %v1017
      %v1099 = vsel %vm789, %v1017, %v1019
      %v1100 = vsel %vm789, %v1021, %v1023
      %v1101 = vsel %vm789, %v1023, %v1025
      %v1102 = vsel %vm789, %v1027, %v1029
      %v1103 = vsel %vm789, %v1029, %v1031
      %v1104 = vsel %vm789, %v1033, %v1035
      %v1105 = vsel %vm789, %v1035, %v1037
      %v1106 = vsel %vm789, %v1039, %v1041
      %v1107 = vsel %vm789, %v1041, %v1043
      %v1108 = vsel %vm789, %v1045, %v1047
      %v1109 = vsel %vm789, %v1047, %v1049
      %v1110 = vsel %vm789, %v1051, %v1053
      %v1111 = vsel %vm789, %v1053, %v1055
      %v1112 = vsel %vm789, %v1057, %v1059
      %v1113 = vsel %vm789, %v1059, %v1061
      %v1114 = vsel %vm789, %v1063, %v1065
      %v1115 = vsel %vm789, %v1065, %v1067
      %v1116 = vsel %vm789, %v1069, %v1071
      %v1117 = vsel %vm789, %v1071, %v1073
      %v1118 = vsel %vm789, %v1075, %v1077
      %v1119 = vsel %vm789, %v1077, %v1079
      %v1120 = vsel %vm789, %v1081, %v1083
      %v1121 = vsel %vm789, %v1083, %v1085
      %v1159 = vsel %vm764, %v952, 0
      %v1162 = vsel %vm764, %v954, 0
      %v1165 = vsel %vm764, %v956, 0
      %1167 = vmatprep.subr.mxu0 %v1087
      %1168 = vmatpush1.msra.mxu0 %v1086
      %1169 = vmatprep.subr.mxu0 %v1089
      %1170 = vmatpush1.msra.mxu0 %v1088
      %1171 = vmatprep.subr.mxu0 %v1091
      %1172 = vmatpush1.msra.mxu0 %v1090
      %1173 = vmatprep.subr.mxu0 %v1093
      %1174 = vmatpush1.msra.mxu0 %v1092
      %1175 = vmatprep.subr.mxu0 %v1095
      %1176 = vmatpush1.msra.mxu0 %v1094
      %1177 = vmatprep.subr.mxu0 %v1097
      %1178 = vmatpush1.msra.mxu0 %v1096
      %1179 = vmatprep.subr.mxu0 %v1099
      %1180 = vmatpush1.msra.mxu0 %v1098
      %1181 = vmatprep.subr.mxu0 %v1101
      %1182 = vmatpush1.msra.mxu0 %v1100
      %1183 = vmatprep.subr.mxu0 %v1103
      %1184 = vmatpush1.msra.mxu0 %v1102
      %1185 = vmatprep.subr.mxu0 %v1105
      %1186 = vmatpush1.msra.mxu0 %v1104
      %1187 = vmatprep.subr.mxu0 %v1107
      %1188 = vmatpush1.msra.mxu0 %v1106
      %1189 = vmatprep.subr.mxu0 %v1109
      %1190 = vmatpush1.msra.mxu0 %v1108
      %1191 = vmatprep.subr.mxu0 %v1111
      %1192 = vmatpush1.msra.mxu0 %v1110
      %1193 = vmatprep.subr.mxu0 %v1113
      %1194 = vmatpush1.msra.mxu0 %v1112
      %1195 = vmatprep.subr.mxu0 %v1115
      %1196 = vmatpush1.msra.mxu0 %v1114
      %1197 = vmatprep.subr.mxu0 %v1117
      %1198 = vmatpush1.msra.mxu0 %v1116
      %1199 = vmatprep.subr.mxu0 %v1119
      %1200 = vmatpush1.msra.mxu0 %v1118
      %1201 = vmatprep.subr.mxu0 %v1121
      %1202 = vmatpush1.msra.mxu0 %v1120
      %1203 = vmatprep.subr.mxu0 0.0
      %1204 = vmatpush1.msra.mxu0 0.0
      %1205 = vmatprep.subr.mxu0 0.0
      %1206 = vmatpush1.msra.mxu0 0.0
      %1207 = vmatprep.subr.mxu0 0.0
      %1208 = vmatpush1.msra.mxu0 0.0
      %1209 = vmatprep.subr.mxu0 0.0
      %1210 = vmatpush1.msra.mxu0 0.0
      %1211 = vmatprep.subr.mxu0 0.0
      %1212 = vmatpush1.msra.mxu0 0.0
      %1213 = vmatprep.subr.mxu0 0.0
      %1214 = vmatpush1.msra.mxu0 0.0
      %1215 = vmatprep.subr.mxu0 0.0
      %1216 = vmatpush1.msra.mxu0 0.0
      %1217 = vmatprep.subr.mxu0 0.0
      %1218 = vmatpush1.msra.mxu0 0.0
      %1219 = vmatprep.subr.mxu0 0.0
      %1220 = vmatpush1.msra.mxu0 0.0
      %1221 = vmatprep.subr.mxu0 0.0
      %1222 = vmatpush1.msra.mxu0 0.0
      %1223 = vmatprep.subr.mxu0 0.0
      %1224 = vmatpush1.msra.mxu0 0.0
      %1225 = vmatprep.subr.mxu0 0.0
      %1226 = vmatpush1.msra.mxu0 0.0
      %1227 = vmatprep.subr.mxu0 0.0
      %1228 = vmatpush1.msra.mxu0 0.0
      %1229 = vmatprep.subr.mxu0 0.0
      %1230 = vmatpush1.msra.mxu0 0.0
      %1231 = vmatprep.mubr.f32.mxu0 %v1159
      %1232 = vmatmul.mubr.f32.gmra.mrb[0].mxu0 %v951
      %v1233 = vpop.f32.mrb[0].mxu0
      %v1234 = vadd.f32 %v963, %v1233
      %v1235 = vpop.f32.mrb[0].mxu0
      %v1236 = vadd.f32 %v963, %v1235
      %1237 = vmatprep.mubr.f32.mxu0 %v1162
      %1238 = vmatmul.mubr.f32.gmra.mrb[0].mxu0 %v953
      %v1239 = vpop.f32.mrb[0].mxu0
      %v1240 = vadd.f32 %v968, %v1239
      %v1241 = vpop.f32.mrb[0].mxu0
      %v1242 = vadd.f32 %v968, %v1241
      %1243 = vmatprep.mubr.f32.mxu0 %v1165
      %1244 = vmatmul.mubr.f32.gmra.mrb[0].mxu0 %v955
      %v1245 = vpop.f32.mrb[0].mxu0
      %v1246 = vadd.f32 %v973, %v1245
      %v1247 = vpop.f32.mrb[0].mxu0
      %v1248 = vadd.f32 %v973, %v1247
      %1249 = vdwg.mxu0
      %v1250 = vmax.f32 %v1234, 0.0
      %v1251 = vmax.f32 %v1236, 0.0
      %v1252 = vmax.f32 %v1240, 0.0
      %v1253 = vmax.f32 %v1242, 0.0
      %v1254 = vmax.f32 %v1246, 0.0
      %v1255 = vmax.f32 %v1248, 0.0
      %v1256 = vxor.u32 %v1254, 2147483648
      %v1257 = vxor.u32 %v1255, 2147483648
      %v1258 = vmul.f32 %v1256, 1.442695
      %v1259 = vpow.pop %v1258
      %v1260 = vmul.f32 %v1257, 1.442695
      %v1261 = vpow.pop %v1260
      %v1262 = vadd.f32 %v1259, 1.0
      %v1263 = vadd.f32 %v1261, 1.0
      %v1264 = vrcp.pop %v1262
      %v1265 = vmul.f32 1.0, %v1264
      %v1266 = vrcp.pop %v1263
      %v1267 = vmul.f32 1.0, %v1266
      %v1268 = vlaneseq
      %v1269 = vshrl.u32 %v1268, 7
      %v1270 = vsub.s32 0, %v1269
      %v1271 = vrot.slane %v1265, %v1270
      %v1272 = vlaneseq
      %v1273 = vshrl.u32 %v1272, 7
      %v1274 = vsub.s32 0, %v1273
      %v1275 = vrot.slane %v1267, %v1274
      %v1276 = vmul.f32 %v1250, %v1271
      %v1277 = vmul.f32 %v1251, %v1275
      %v1278 = vlaneseq
      %v1279 = vshrl.u32 %v1278, 7
      %v1280 = vsub.s32 1, %v1279
      %v1281 = vrot.slane %v1265, %v1280
      %v1282 = vlaneseq
      %v1283 = vshrl.u32 %v1282, 7
      %v1284 = vsub.s32 1, %v1283
      %v1285 = vrot.slane %v1267, %v1284
      %v1286 = vmul.f32 %v1252, %v1281
      %v1287 = vmul.f32 %v1253, %v1285
      %v1288 = vadd.f32 %v1276, %v1286
      %v1289 = vadd.f32 %v1277, %v1287
      %v1290 = vld [vmem:[%s5] sm:$0x3]
      %v1291 = vld [vmem:[%s6] sm:$0x3]
      %1293 = vset.pattern.permute.xlu0 0
      %1294 = vperm.xlu0 %1293, %v1291
      %v1295 = vpop.permute.xlu0 %1294
      %vm1297 = vcmask 64512
      %v1299 = vsel %vm1297, %v1290, 0
      %1301 = vmatprep.subr.mxu0 %v1289
      %1302 = vmatpush1.msra.mxu0 %v1288
      %1303 = vmatprep.subr.mxu0 0.0
      %1304 = vmatpush1.msra.mxu0 0.0
      %1305 = vmatprep.subr.mxu0 0.0
      %1306 = vmatpush1.msra.mxu0 0.0
      %1307 = vmatprep.subr.mxu0 0.0
      %1308 = vmatpush1.msra.mxu0 0.0
      %1309 = vmatprep.subr.mxu0 0.0
      %1310 = vmatpush1.msra.mxu0 0.0
      %1311 = vmatprep.subr.mxu0 0.0
      %1312 = vmatpush1.msra.mxu0 0.0
      %1313 = vmatprep.subr.mxu0 0.0
      %1314 = vmatpush1.msra.mxu0 0.0
      %1315 = vmatprep.subr.mxu0 0.0
      %1316 = vmatpush1.msra.mxu0 0.0
      %1317 = vmatprep.subr.mxu0 0.0
      %1318 = vmatpush1.msra.mxu0 0.0
      %1319 = vmatprep.subr.mxu0 0.0
      %1320 = vmatpush1.msra.mxu0 0.0
      %1321 = vmatprep.subr.mxu0 0.0
      %1322 = vmatpush1.msra.mxu0 0.0
      %1323 = vmatprep.subr.mxu0 0.0
      %1324 = vmatpush1.msra.mxu0 0.0
      %1325 = vmatprep.subr.mxu0 0.0
      %1326 = vmatpush1.msra.mxu0 0.0
      %1327 = vmatprep.subr.mxu0 0.0
      %1328 = vmatpush1.msra.mxu0 0.0
      %1329 = vmatprep.subr.mxu0 0.0
      %1330 = vmatpush1.msra.mxu0 0.0
      %1331 = vmatprep.subr.mxu0 0.0
      %1332 = vmatpush1.msra.mxu0 0.0
      %1333 = vmatprep.subr.mxu0 0.0
      %1334 = vmatpush1.msra.mxu0 0.0
      %1335 = vmatprep.subr.mxu0 0.0
      %1336 = vmatpush1.msra.mxu0 0.0
      %1337 = vmatprep.subr.mxu0 0.0
      %1338 = vmatpush1.msra.mxu0 0.0
      %1339 = vmatprep.subr.mxu0 0.0
      %1340 = vmatpush1.msra.mxu0 0.0
      %1341 = vmatprep.subr.mxu0 0.0
      %1342 = vmatpush1.msra.mxu0 0.0
      %1343 = vmatprep.subr.mxu0 0.0
      %1344 = vmatpush1.msra.mxu0 0.0
      %1345 = vmatprep.subr.mxu0 0.0
      %1346 = vmatpush1.msra.mxu0 0.0
      %1347 = vmatprep.subr.mxu0 0.0
      %1348 = vmatpush1.msra.mxu0 0.0
      %1349 = vmatprep.subr.mxu0 0.0
      %1350 = vmatpush1.msra.mxu0 0.0
      %1351 = vmatprep.subr.mxu0 0.0
      %1352 = vmatpush1.msra.mxu0 0.0
      %1353 = vmatprep.subr.mxu0 0.0
      %1354 = vmatpush1.msra.mxu0 0.0
      %1355 = vmatprep.subr.mxu0 0.0
      %1356 = vmatpush1.msra.mxu0 0.0
      %1357 = vmatprep.subr.mxu0 0.0
      %1358 = vmatpush1.msra.mxu0 0.0
      %1359 = vmatprep.subr.mxu0 0.0
      %1360 = vmatpush1.msra.mxu0 0.0
      %1361 = vmatprep.subr.mxu0 0.0
      %1362 = vmatpush1.msra.mxu0 0.0
      %1363 = vmatprep.subr.mxu0 0.0
      %1364 = vmatpush1.msra.mxu0 0.0
      %1365 = vmatprep.mubr.f32.mxu0 0.0
      %1366 = vmatmul.mubr.f32.gmra.mrb[0].mxu0 %v1299
      %v1367 = vpop.f32.mrb[0].mxu0
      %v1368 = vadd.f32 %v1295, %v1367
      %v1369 = vpop.f32.mrb[0].mxu0
      %v1370 = vadd.f32 %v1295, %v1369
      %1371 = vdwg.mxu0
      %v1372 = vmax.f32 %v1368, 0.0
      %v1373 = vmax.f32 %v1370, 0.0
      %v1374 = vld [vmem:[%s7] sm:$0xff]
      %v1375 = vld [vmem:[%s8] sm:$0xff]
      %1377 = vset.pattern.permute.xlu0 0
      %1378 = vperm.xlu0 %1377, %v1375
      %v1379 = vpop.permute.xlu0 %1378
      %vm1381 = vcmask 15360
      %v1383 = vsel %vm1381, %v1374, 0
      %vm1385 = vcmask 1041408
      %v1387 = vsel %vm1385, %v1372, 0
      %v1390 = vsel %vm1385, %v1373, 0
      %1392 = vmatprep.subr.mxu0 %v1390
      %1393 = vmatpush1.msra.mxu0 %v1387
      %1394 = vmatprep.subr.mxu0 0.0
      %1395 = vmatpush1.msra.mxu0 0.0
      %1396 = vmatprep.subr.mxu0 0.0
      %1397 = vmatpush1.msra.mxu0 0.0
      %1398 = vmatprep.subr.mxu0 0.0
      %1399 = vmatpush1.msra.mxu0 0.0
      %1400 = vmatprep.subr.mxu0 0.0
      %1401 = vmatpush1.msra.mxu0 0.0
      %1402 = vmatprep.subr.mxu0 0.0
      %1403 = vmatpush1.msra.mxu0 0.0
      %1404 = vmatprep.subr.mxu0 0.0
      %1405 = vmatpush1.msra.mxu0 0.0
      %1406 = vmatprep.subr.mxu0 0.0
      %1407 = vmatpush1.msra.mxu0 0.0
      %1408 = vmatprep.subr.mxu0 0.0
      %1409 = vmatpush1.msra.mxu0 0.0
      %1410 = vmatprep.subr.mxu0 0.0
      %1411 = vmatpush1.msra.mxu0 0.0
      %1412 = vmatprep.subr.mxu0 0.0
      %1413 = vmatpush1.msra.mxu0 0.0
      %1414 = vmatprep.subr.mxu0 0.0
      %1415 = vmatpush1.msra.mxu0 0.0
      %1416 = vmatprep.subr.mxu0 0.0
      %1417 = vmatpush1.msra.mxu0 0.0
      %1418 = vmatprep.subr.mxu0 0.0
      %1419 = vmatpush1.msra.mxu0 0.0
      %1420 = vmatprep.subr.mxu0 0.0
      %1421 = vmatpush1.msra.mxu0 0.0
      %1422 = vmatprep.subr.mxu0 0.0
      %1423 = vmatpush1.msra.mxu0 0.0
      %1424 = vmatprep.subr.mxu0 0.0
      %1425 = vmatpush1.msra.mxu0 0.0
      %1426 = vmatprep.subr.mxu0 0.0
      %1427 = vmatpush1.msra.mxu0 0.0
      %1428 = vmatprep.subr.mxu0 0.0
      %1429 = vmatpush1.msra.mxu0 0.0
      %1430 = vmatprep.subr.mxu0 0.0
      %1431 = vmatpush1.msra.mxu0 0.0
      %1432 = vmatprep.subr.mxu0 0.0
      %1433 = vmatpush1.msra.mxu0 0.0
      %1434 = vmatprep.subr.mxu0 0.0
      %1435 = vmatpush1.msra.mxu0 0.0
      %1436 = vmatprep.subr.mxu0 0.0
      %1437 = vmatpush1.msra.mxu0 0.0
      %1438 = vmatprep.subr.mxu0 0.0
      %1439 = vmatpush1.msra.mxu0 0.0
      %1440 = vmatprep.subr.mxu0 0.0
      %1441 = vmatpush1.msra.mxu0 0.0
      %1442 = vmatprep.subr.mxu0 0.0
      %1443 = vmatpush1.msra.mxu0 0.0
      %1444 = vmatprep.subr.mxu0 0.0
      %1445 = vmatpush1.msra.mxu0 0.0
      %1446 = vmatprep.subr.mxu0 0.0
      %1447 = vmatpush1.msra.mxu0 0.0
      %1448 = vmatprep.subr.mxu0 0.0
      %1449 = vmatpush1.msra.mxu0 0.0
      %1450 = vmatprep.subr.mxu0 0.0
      %1451 = vmatpush1.msra.mxu0 0.0
      %1452 = vmatprep.subr.mxu0 0.0
      %1453 = vmatpush1.msra.mxu0 0.0
      %1454 = vmatprep.subr.mxu0 0.0
      %1455 = vmatpush1.msra.mxu0 0.0
      %1456 = vmatprep.mubr.f32.mxu0 0.0
      %1457 = vmatmul.mubr.f32.gmra.mrb[0].mxu0 %v1383
      %v1458 = vpop.f32.mrb[0].mxu0
      %v1459 = vadd.f32 %v1379, %v1458
      %v1460 = vpop.f32.mrb[0].mxu0
      %v1461 = vadd.f32 %v1379, %v1460
      %1462 = vdwg.mxu0
      %v1463 = vadd.f32 %v1288, %v1289
      %1464 = vadd.xlane.f32.xlu0 %v1463
      %v1465 = vpop.xlane.xlu0 %1464
      %v1466 = vmul.f32 %v1465, 0.00390625
      %v1467 = vld [vmem:[%s9] sm:$0x3]
      %v1468 = vld [vmem:[%s10] sm:$0x3]
      %v1470 = vsel %vm1297, %v1467, 0
      %1472 = vmatprep.subr.mxu0 0.0
      %1473 = vmatpush1.msra.mxu0 %v1466
      %1474 = vmatprep.subr.mxu0 0.0
      %1475 = vmatpush1.msra.mxu0 0.0
      %1476 = vmatprep.subr.mxu0 0.0
      %1477 = vmatpush1.msra.mxu0 0.0
      %1478 = vmatprep.subr.mxu0 0.0
      %1479 = vmatpush1.msra.mxu0 0.0
      %1480 = vmatprep.subr.mxu0 0.0
      %1481 = vmatpush1.msra.mxu0 0.0
      %1482 = vmatprep.subr.mxu0 0.0
      %1483 = vmatpush1.msra.mxu0 0.0
      %1484 = vmatprep.subr.mxu0 0.0
      %1485 = vmatpush1.msra.mxu0 0.0
      %1486 = vmatprep.subr.mxu0 0.0
      %1487 = vmatpush1.msra.mxu0 0.0
      %1488 = vmatprep.subr.mxu0 0.0
      %1489 = vmatpush1.msra.mxu0 0.0
      %1490 = vmatprep.subr.mxu0 0.0
      %1491 = vmatpush1.msra.mxu0 0.0
      %1492 = vmatprep.subr.mxu0 0.0
      %1493 = vmatpush1.msra.mxu0 0.0
      %1494 = vmatprep.subr.mxu0 0.0
      %1495 = vmatpush1.msra.mxu0 0.0
      %1496 = vmatprep.subr.mxu0 0.0
      %1497 = vmatpush1.msra.mxu0 0.0
      %1498 = vmatprep.subr.mxu0 0.0
      %1499 = vmatpush1.msra.mxu0 0.0
      %1500 = vmatprep.subr.mxu0 0.0
      %1501 = vmatpush1.msra.mxu0 0.0
      %1502 = vmatprep.subr.mxu0 0.0
      %1503 = vmatpush1.msra.mxu0 0.0
      %1504 = vmatprep.subr.mxu0 0.0
      %1505 = vmatpush1.msra.mxu0 0.0
      %1506 = vmatprep.subr.mxu0 0.0
      %1507 = vmatpush1.msra.mxu0 0.0
      %1508 = vmatprep.subr.mxu0 0.0
      %1509 = vmatpush1.msra.mxu0 0.0
      %1510 = vmatprep.subr.mxu0 0.0
      %1511 = vmatpush1.msra.mxu0 0.0
      %1512 = vmatprep.subr.mxu0 0.0
      %1513 = vmatpush1.msra.mxu0 0.0
      %1514 = vmatprep.subr.mxu0 0.0
      %1515 = vmatpush1.msra.mxu0 0.0
      %1516 = vmatprep.subr.mxu0 0.0
      %1517 = vmatpush1.msra.mxu0 0.0
      %1518 = vmatprep.subr.mxu0 0.0
      %1519 = vmatpush1.msra.mxu0 0.0
      %1520 = vmatprep.subr.mxu0 0.0
      %1521 = vmatpush1.msra.mxu0 0.0
      %1522 = vmatprep.subr.mxu0 0.0
      %1523 = vmatpush1.msra.mxu0 0.0
      %1524 = vmatprep.subr.mxu0 0.0
      %1525 = vmatpush1.msra.mxu0 0.0
      %1526 = vmatprep.subr.mxu0 0.0
      %1527 = vmatpush1.msra.mxu0 0.0
      %1528 = vmatprep.subr.mxu0 0.0
      %1529 = vmatpush1.msra.mxu0 0.0
      %1530 = vmatprep.subr.mxu0 0.0
      %1531 = vmatpush1.msra.mxu0 0.0
      %1532 = vmatprep.subr.mxu0 0.0
      %1533 = vmatpush1.msra.mxu0 0.0
      %1534 = vmatprep.subr.mxu0 0.0
      %1535 = vmatpush1.msra.mxu0 0.0
      %1536 = vmatprep.mubr.f32.mxu0 0.0
      %1537 = vmatmul.mubr.f32.gmra.mrb[0].mxu0 %v1470
      %v1538 = vpop.f32.mrb[0].mxu0
      %v1539 = vadd.f32 %v1468, %v1538
      %v1540 = vpop.f32.mrb[0].mxu0
      %1541 = vdwg.mxu0
      %v1542 = vmax.f32 %v1539, 0.0
      %v1543 = vld [vmem:[%s11] sm:$0xff]
      %v1544 = vld [vmem:[%s12] sm:$0xff]
      %v1546 = vsel %vm1381, %v1543, 0
      %v1549 = vsel %vm1385, %v1542, 0
      %1551 = vmatprep.subr.mxu0 0.0
      %1552 = vmatpush1.msra.mxu0 %v1549
      %1553 = vmatprep.subr.mxu0 0.0
      %1554 = vmatpush1.msra.mxu0 0.0
      %1555 = vmatprep.subr.mxu0 0.0
      %1556 = vmatpush1.msra.mxu0 0.0
      %1557 = vmatprep.subr.mxu0 0.0
      %1558 = vmatpush1.msra.mxu0 0.0
      %1559 = vmatprep.subr.mxu0 0.0
      %1560 = vmatpush1.msra.mxu0 0.0
      %1561 = vmatprep.subr.mxu0 0.0
      %1562 = vmatpush1.msra.mxu0 0.0
      %1563 = vmatprep.subr.mxu0 0.0
      %1564 = vmatpush1.msra.mxu0 0.0
      %1565 = vmatprep.subr.mxu0 0.0
      %1566 = vmatpush1.msra.mxu0 0.0
      %1567 = vmatprep.subr.mxu0 0.0
      %1568 = vmatpush1.msra.mxu0 0.0
      %1569 = vmatprep.subr.mxu0 0.0
      %1570 = vmatpush1.msra.mxu0 0.0
      %1571 = vmatprep.subr.mxu0 0.0
      %1572 = vmatpush1.msra.mxu0 0.0
      %1573 = vmatprep.subr.mxu0 0.0
      %1574 = vmatpush1.msra.mxu0 0.0
      %1575 = vmatprep.subr.mxu0 0.0
      %1576 = vmatpush1.msra.mxu0 0.0
      %1577 = vmatprep.subr.mxu0 0.0
      %1578 = vmatpush1.msra.mxu0 0.0
      %1579 = vmatprep.subr.mxu0 0.0
      %1580 = vmatpush1.msra.mxu0 0.0
      %1581 = vmatprep.subr.mxu0 0.0
      %1582 = vmatpush1.msra.mxu0 0.0
      %1583 = vmatprep.subr.mxu0 0.0
      %1584 = vmatpush1.msra.mxu0 0.0
      %1585 = vmatprep.subr.mxu0 0.0
      %1586 = vmatpush1.msra.mxu0 0.0
      %1587 = vmatprep.subr.mxu0 0.0
      %1588 = vmatpush1.msra.mxu0 0.0
      %1589 = vmatprep.subr.mxu0 0.0
      %1590 = vmatpush1.msra.mxu0 0.0
      %1591 = vmatprep.subr.mxu0 0.0
      %1592 = vmatpush1.msra.mxu0 0.0
      %1593 = vmatprep.subr.mxu0 0.0
      %1594 = vmatpush1.msra.mxu0 0.0
      %1595 = vmatprep.subr.mxu0 0.0
      %1596 = vmatpush1.msra.mxu0 0.0
      %1597 = vmatprep.subr.mxu0 0.0
      %1598 = vmatpush1.msra.mxu0 0.0
      %1599 = vmatprep.subr.mxu0 0.0
      %1600 = vmatpush1.msra.mxu0 0.0
      %1601 = vmatprep.subr.mxu0 0.0
      %1602 = vmatpush1.msra.mxu0 0.0
      %1603 = vmatprep.subr.mxu0 0.0
      %1604 = vmatpush1.msra.mxu0 0.0
      %1605 = vmatprep.subr.mxu0 0.0
      %1606 = vmatpush1.msra.mxu0 0.0
      %1607 = vmatprep.subr.mxu0 0.0
      %1608 = vmatpush1.msra.mxu0 0.0
      %1609 = vmatprep.subr.mxu0 0.0
      %1610 = vmatpush1.msra.mxu0 0.0
      %1611 = vmatprep.subr.mxu0 0.0
      %1612 = vmatpush1.msra.mxu0 0.0
      %1613 = vmatprep.subr.mxu0 0.0
      %1614 = vmatpush1.msra.mxu0 0.0
      %1615 = vmatprep.mubr.f32.mxu0 0.0
      %1616 = vmatmul.mubr.f32.gmra.mrb[0].mxu0 %v1546
      %v1617 = vpop.f32.mrb[0].mxu0
      %v1618 = vadd.f32 %v1544, %v1617
      %v1619 = vpop.f32.mrb[0].mxu0
      %1620 = vdwg.mxu0
      %v1621 = vmax.f32 %v1288, %v1289
      %1622 = vmax.xlane.f32.xlu0 %v1621
      %v1623 = vpop.xlane.xlu0 %1622
      %v1624 = vld [vmem:[%s13] sm:$0x3]
      %v1625 = vld [vmem:[%s14] sm:$0x3]
      %v1627 = vsel %vm1297, %v1624, 0
      %1629 = vmatprep.subr.mxu0 0.0
      %1630 = vmatpush1.msra.mxu0 %v1623
      %1631 = vmatprep.subr.mxu0 0.0
      %1632 = vmatpush1.msra.mxu0 0.0
      %1633 = vmatprep.subr.mxu0 0.0
      %1634 = vmatpush1.msra.mxu0 0.0
      %1635 = vmatprep.subr.mxu0 0.0
      %1636 = vmatpush1.msra.mxu0 0.0
      %1637 = vmatprep.subr.mxu0 0.0
      %1638 = vmatpush1.msra.mxu0 0.0
      %1639 = vmatprep.subr.mxu0 0.0
      %1640 = vmatpush1.msra.mxu0 0.0
      %1641 = vmatprep.subr.mxu0 0.0
      %1642 = vmatpush1.msra.mxu0 0.0
      %1643 = vmatprep.subr.mxu0 0.0
      %1644 = vmatpush1.msra.mxu0 0.0
      %1645 = vmatprep.subr.mxu0 0.0
      %1646 = vmatpush1.msra.mxu0 0.0
      %1647 = vmatprep.subr.mxu0 0.0
      %1648 = vmatpush1.msra.mxu0 0.0
      %1649 = vmatprep.subr.mxu0 0.0
      %1650 = vmatpush1.msra.mxu0 0.0
      %1651 = vmatprep.subr.mxu0 0.0
      %1652 = vmatpush1.msra.mxu0 0.0
      %1653 = vmatprep.subr.mxu0 0.0
      %1654 = vmatpush1.msra.mxu0 0.0
      %1655 = vmatprep.subr.mxu0 0.0
      %1656 = vmatpush1.msra.mxu0 0.0
      %1657 = vmatprep.subr.mxu0 0.0
      %1658 = vmatpush1.msra.mxu0 0.0
      %1659 = vmatprep.subr.mxu0 0.0
      %1660 = vmatpush1.msra.mxu0 0.0
      %1661 = vmatprep.subr.mxu0 0.0
      %1662 = vmatpush1.msra.mxu0 0.0
      %1663 = vmatprep.subr.mxu0 0.0
      %1664 = vmatpush1.msra.mxu0 0.0
      %1665 = vmatprep.subr.mxu0 0.0
      %1666 = vmatpush1.msra.mxu0 0.0
      %1667 = vmatprep.subr.mxu0 0.0
      %1668 = vmatpush1.msra.mxu0 0.0
      %1669 = vmatprep.subr.mxu0 0.0
      %1670 = vmatpush1.msra.mxu0 0.0
      %1671 = vmatprep.subr.mxu0 0.0
      %1672 = vmatpush1.msra.mxu0 0.0
      %1673 = vmatprep.subr.mxu0 0.0
      %1674 = vmatpush1.msra.mxu0 0.0
      %1675 = vmatprep.subr.mxu0 0.0
      %1676 = vmatpush1.msra.mxu0 0.0
      %1677 = vmatprep.subr.mxu0 0.0
      %1678 = vmatpush1.msra.mxu0 0.0
      %1679 = vmatprep.subr.mxu0 0.0
      %1680 = vmatpush1.msra.mxu0 0.0
      %1681 = vmatprep.subr.mxu0 0.0
      %1682 = vmatpush1.msra.mxu0 0.0
      %1683 = vmatprep.subr.mxu0 0.0
      %1684 = vmatpush1.msra.mxu0 0.0
      %1685 = vmatprep.subr.mxu0 0.0
      %1686 = vmatpush1.msra.mxu0 0.0
      %1687 = vmatprep.subr.mxu0 0.0
      %1688 = vmatpush1.msra.mxu0 0.0
      %1689 = vmatprep.subr.mxu0 0.0
      %1690 = vmatpush1.msra.mxu0 0.0
      %1691 = vmatprep.subr.mxu0 0.0
      %1692 = vmatpush1.msra.mxu0 0.0
      %1693 = vmatprep.mubr.f32.mxu0 0.0
      %1694 = vmatmul.mubr.f32.gmra.mrb[0].mxu0 %v1627
      %v1695 = vpop.f32.mrb[0].mxu0
      %v1696 = vadd.f32 %v1625, %v1695
      %v1697 = vpop.f32.mrb[0].mxu0
      %1698 = vdwg.mxu0
      %v1699 = vmax.f32 %v1696, 0.0
      %v1700 = vld [vmem:[%s15] sm:$0xff]
      %v1701 = vld [vmem:[%s16] sm:$0xff]
      %v1703 = vsel %vm1381, %v1700, 0
      %v1706 = vsel %vm1385, %v1699, 0
      %1708 = vmatprep.subr.mxu0 0.0
      %1709 = vmatpush1.msra.mxu0 %v1706
      %1710 = vmatprep.subr.mxu0 0.0
      %1711 = vmatpush1.msra.mxu0 0.0
      %1712 = vmatprep.subr.mxu0 0.0
      %1713 = vmatpush1.msra.mxu0 0.0
      %1714 = vmatprep.subr.mxu0 0.0
      %1715 = vmatpush1.msra.mxu0 0.0
      %1716 = vmatprep.subr.mxu0 0.0
      %1717 = vmatpush1.msra.mxu0 0.0
      %1718 = vmatprep.subr.mxu0 0.0
      %1719 = vmatpush1.msra.mxu0 0.0
      %1720 = vmatprep.subr.mxu0 0.0
      %1721 = vmatpush1.msra.mxu0 0.0
      %1722 = vmatprep.subr.mxu0 0.0
      %1723 = vmatpush1.msra.mxu0 0.0
      %1724 = vmatprep.subr.mxu0 0.0
      %1725 = vmatpush1.msra.mxu0 0.0
      %1726 = vmatprep.subr.mxu0 0.0
      %1727 = vmatpush1.msra.mxu0 0.0
      %1728 = vmatprep.subr.mxu0 0.0
      %1729 = vmatpush1.msra.mxu0 0.0
      %1730 = vmatprep.subr.mxu0 0.0
      %1731 = vmatpush1.msra.mxu0 0.0
      %1732 = vmatprep.subr.mxu0 0.0
      %1733 = vmatpush1.msra.mxu0 0.0
      %1734 = vmatprep.subr.mxu0 0.0
      %1735 = vmatpush1.msra.mxu0 0.0
      %1736 = vmatprep.subr.mxu0 0.0
      %1737 = vmatpush1.msra.mxu0 0.0
      %1738 = vmatprep.subr.mxu0 0.0
      %1739 = vmatpush1.msra.mxu0 0.0
      %1740 = vmatprep.subr.mxu0 0.0
      %1741 = vmatpush1.msra.mxu0 0.0
      %1742 = vmatprep.subr.mxu0 0.0
      %1743 = vmatpush1.msra.mxu0 0.0
      %1744 = vmatprep.subr.mxu0 0.0
      %1745 = vmatpush1.msra.mxu0 0.0
      %1746 = vmatprep.subr.mxu0 0.0
      %1747 = vmatpush1.msra.mxu0 0.0
      %1748 = vmatprep.subr.mxu0 0.0
      %1749 = vmatpush1.msra.mxu0 0.0
      %1750 = vmatprep.subr.mxu0 0.0
      %1751 = vmatpush1.msra.mxu0 0.0
      %1752 = vmatprep.subr.mxu0 0.0
      %1753 = vmatpush1.msra.mxu0 0.0
      %1754 = vmatprep.subr.mxu0 0.0
      %1755 = vmatpush1.msra.mxu0 0.0
      %1756 = vmatprep.subr.mxu0 0.0
      %1757 = vmatpush1.msra.mxu0 0.0
      %1758 = vmatprep.subr.mxu0 0.0
      %1759 = vmatpush1.msra.mxu0 0.0
      %1760 = vmatprep.subr.mxu0 0.0
      %1761 = vmatpush1.msra.mxu0 0.0
      %1762 = vmatprep.subr.mxu0 0.0
      %1763 = vmatpush1.msra.mxu0 0.0
      %1764 = vmatprep.subr.mxu0 0.0
      %1765 = vmatpush1.msra.mxu0 0.0
      %1766 = vmatprep.subr.mxu0 0.0
      %1767 = vmatpush1.msra.mxu0 0.0
      %1768 = vmatprep.subr.mxu0 0.0
      %1769 = vmatpush1.msra.mxu0 0.0
      %1770 = vmatprep.subr.mxu0 0.0
      %1771 = vmatpush1.msra.mxu0 0.0
      %1772 = vmatprep.mubr.f32.mxu0 0.0
      %1773 = vmatmul.mubr.f32.gmra.mrb[0].mxu0 %v1703
      %v1774 = vpop.f32.mrb[0].mxu0
      %v1775 = vadd.f32 %v1701, %v1774
      %v1776 = vpop.f32.mrb[0].mxu0
      %1777 = vdwg.mxu0
      %v1778 = vrot.slane %v1288, 4
      %v1779 = vadd.f32 %v1288, %v1778
      %v1780 = vrot.slane %v1779, 2
      %v1781 = vadd.f32 %v1779, %v1780
      %v1782 = vrot.slane %v1781, 1
      %v1783 = vadd.f32 %v1781, %v1782
      %v1784 = vrot.slane %v1289, 4
      %v1785 = vadd.f32 %v1289, %v1784
      %v1786 = vrot.slane %v1785, 2
      %v1787 = vadd.f32 %v1785, %v1786
      %v1788 = vrot.slane %v1787, 1
      %v1789 = vadd.f32 %v1787, %v1788
      %v1790 = vmul.f32 %v1783, 0.125
      %v1791 = vmul.f32 %v1789, 0.125
      %v1792 = vrot.slane %v1288, 4
      %v1793 = vmax.f32 %v1288, %v1792
      %v1794 = vrot.slane %v1793, 2
      %v1795 = vmax.f32 %v1793, %v1794
      %v1796 = vrot.slane %v1795, 1
      %v1797 = vmax.f32 %v1795, %v1796
      %v1798 = vrot.slane %v1289, 4
      %v1799 = vmax.f32 %v1289, %v1798
      %v1800 = vrot.slane %v1799, 2
      %v1801 = vmax.f32 %v1799, %v1800
      %v1802 = vrot.slane %v1801, 1
      %v1803 = vmax.f32 %v1801, %v1802
      %v1804 = vld [vmem:[%s17] sm:$0xff]
      %v1805 = vld [vmem:[%s17 + $0x8] sm:$0xff]
      %v1806 = vld [vmem:[%s17 + $0x10] sm:$0xff]
      %v1807 = vld [vmem:[%s17 + $0x18] sm:$0xff]
      %v1808 = vld [vmem:[%s17 + $0x20] sm:$0xff]
      %v1809 = vld [vmem:[%s17 + $0x28] sm:$0xff]
      %v1810 = vld [vmem:[%s17 + $0x30] sm:$0xff]
      %v1811 = vld [vmem:[%s17 + $0x38] sm:$0xff]
      %v1812 = vld [vmem:[%s17 + $0x40] sm:$0xff]
      %v1813 = vld [vmem:[%s17 + $0x48] sm:$0xff]
      %v1814 = vld [vmem:[%s17 + $0x50] sm:$0xff]
      %v1815 = vld [vmem:[%s17 + $0x58] sm:$0xff]
      %v1816 = vld [vmem:[%s17 + $0x60] sm:$0xff]
      %v1817 = vld [vmem:[%s17 + $0x68] sm:$0xff]
      %v1818 = vld [vmem:[%s17 + $0x70] sm:$0xff]
      %v1819 = vld [vmem:[%s17 + $0x78] sm:$0xff]
      %v1820 = vld [vmem:[%s17 + $0x80] sm:$0xff]
      %v1821 = vld [vmem:[%s17 + $0x88] sm:$0xff]
      %v1822 = vld [vmem:[%s17 + $0x90] sm:$0xff]
      %v1823 = vld [vmem:[%s17 + $0x98] sm:$0xff]
      %v1824 = vld [vmem:[%s17 + $0xa0] sm:$0xff]
      %v1825 = vld [vmem:[%s17 + $0xa8] sm:$0xff]
      %v1826 = vld [vmem:[%s17 + $0xb0] sm:$0xff]
      %v1827 = vld [vmem:[%s17 + $0xb8] sm:$0xff]
      %v1828 = vld [vmem:[%s17 + $0xc0] sm:$0xff]
      %v1829 = vld [vmem:[%s17 + $0xc8] sm:$0xff]
      %v1830 = vld [vmem:[%s17 + $0xd0] sm:$0xff]
      %v1831 = vld [vmem:[%s17 + $0xd8] sm:$0xff]
      %v1832 = vld [vmem:[%s17 + $0xe0] sm:$0xff]
      %v1833 = vld [vmem:[%s17 + $0xe8] sm:$0xff]
      %v1834 = vld [vmem:[%s17 + $0xf0] sm:$0xff]
      %v1835 = vld [vmem:[%s17 + $0xf8] sm:$0xff]
      %v1836 = vld [vmem:[%s17 + $0x100] sm:$0xff]
      %v1837 = vld [vmem:[%s17 + $0x108] sm:$0xff]
      %v1838 = vld [vmem:[%s17 + $0x110] sm:$0xff]
      %v1839 = vld [vmem:[%s17 + $0x118] sm:$0xff]
      %v1840 = vld [vmem:[%s17 + $0x120] sm:$0xff]
      %v1841 = vld [vmem:[%s17 + $0x128] sm:$0xff]
      %v1842 = vld [vmem:[%s17 + $0x130] sm:$0xff]
      %v1843 = vld [vmem:[%s17 + $0x138] sm:$0xff]
      %v1844 = vld [vmem:[%s17 + $0x140] sm:$0xff]
      %v1845 = vld [vmem:[%s17 + $0x148] sm:$0xff]
      %v1846 = vld [vmem:[%s17 + $0x150] sm:$0xff]
      %v1847 = vld [vmem:[%s17 + $0x158] sm:$0xff]
      %v1848 = vld [vmem:[%s17 + $0x160] sm:$0xff]
      %v1849 = vld [vmem:[%s17 + $0x168] sm:$0xff]
      %v1850 = vld [vmem:[%s17 + $0x170] sm:$0xff]
      %v1851 = vld [vmem:[%s17 + $0x178] sm:$0xff]
      %v1852 = vld [vmem:[%s17 + $0x180] sm:$0xff]
      %v1853 = vld [vmem:[%s17 + $0x188] sm:$0xff]
      %v1854 = vld [vmem:[%s17 + $0x190] sm:$0xff]
      %v1855 = vld [vmem:[%s17 + $0x198] sm:$0xff]
      %v1856 = vld [vmem:[%s17 + $0x1a0] sm:$0xff]
      %v1857 = vld [vmem:[%s17 + $0x1a8] sm:$0xff]
      %v1858 = vld [vmem:[%s17 + $0x1b0] sm:$0xff]
      %v1859 = vld [vmem:[%s17 + $0x1b8] sm:$0xff]
      %v1860 = vld [vmem:[%s17 + $0x1c0] sm:$0xff]
      %v1861 = vld [vmem:[%s17 + $0x1c8] sm:$0xff]
      %v1862 = vld [vmem:[%s17 + $0x1d0] sm:$0xff]
      %v1863 = vld [vmem:[%s17 + $0x1d8] sm:$0xff]
      %v1864 = vld [vmem:[%s17 + $0x1e0] sm:$0xff]
      %v1865 = vld [vmem:[%s17 + $0x1e8] sm:$0xff]
      %v1866 = vld [vmem:[%s17 + $0x1f0] sm:$0xff]
      %v1867 = vld [vmem:[%s17 + $0x1f8] sm:$0xff]
      %v1868 = vld [vmem:[%s17 + $0x200] sm:$0xff]
      %v1869 = vld [vmem:[%s17 + $0x208] sm:$0xff]
      %v1870 = vld [vmem:[%s17 + $0x210] sm:$0xff]
      %v1871 = vld [vmem:[%s17 + $0x218] sm:$0xff]
      %v1872 = vld [vmem:[%s17 + $0x220] sm:$0xff]
      %v1873 = vld [vmem:[%s17 + $0x228] sm:$0xff]
      %v1874 = vld [vmem:[%s17 + $0x230] sm:$0xff]
      %v1875 = vld [vmem:[%s17 + $0x238] sm:$0xff]
      %v1876 = vld [vmem:[%s17 + $0x240] sm:$0xff]
      %v1877 = vld [vmem:[%s17 + $0x248] sm:$0xff]
      %v1878 = vld [vmem:[%s17 + $0x250] sm:$0xff]
      %v1879 = vld [vmem:[%s17 + $0x258] sm:$0xff]
      %v1880 = vld [vmem:[%s17 + $0x260] sm:$0xff]
      %v1881 = vld [vmem:[%s17 + $0x268] sm:$0xff]
      %v1882 = vld [vmem:[%s17 + $0x270] sm:$0xff]
      %v1883 = vld [vmem:[%s17 + $0x278] sm:$0xff]
      %v1884 = vld [vmem:[%s17 + $0x280] sm:$0xff]
      %v1885 = vld [vmem:[%s17 + $0x288] sm:$0xff]
      %v1886 = vld [vmem:[%s17 + $0x290] sm:$0xff]
      %v1887 = vld [vmem:[%s17 + $0x298] sm:$0xff]
      %v1888 = vld [vmem:[%s17 + $0x2a0] sm:$0xff]
      %v1889 = vld [vmem:[%s17 + $0x2a8] sm:$0xff]
      %v1890 = vld [vmem:[%s17 + $0x2b0] sm:$0xff]
      %v1891 = vld [vmem:[%s17 + $0x2b8] sm:$0xff]
      %v1892 = vld [vmem:[%s17 + $0x2c0] sm:$0xff]
      %v1893 = vld [vmem:[%s17 + $0x2c8] sm:$0xff]
      %v1894 = vld [vmem:[%s17 + $0x2d0] sm:$0xff]
      %v1895 = vld [vmem:[%s17 + $0x2d8] sm:$0xff]
      %v1896 = vld [vmem:[%s17 + $0x2e0] sm:$0xff]
      %v1897 = vld [vmem:[%s17 + $0x2e8] sm:$0xff]
      %v1898 = vld [vmem:[%s17 + $0x2f0] sm:$0xff]
      %v1899 = vld [vmem:[%s17 + $0x2f8] sm:$0xff]
      %v1900 = vld [vmem:[%s17 + $0x300] sm:$0xff]
      %v1901 = vld [vmem:[%s17 + $0x308] sm:$0xff]
      %v1902 = vld [vmem:[%s17 + $0x310] sm:$0xff]
      %v1903 = vld [vmem:[%s17 + $0x318] sm:$0xff]
      %v1904 = vld [vmem:[%s17 + $0x320] sm:$0xff]
      %v1905 = vld [vmem:[%s17 + $0x328] sm:$0xff]
      %v1906 = vld [vmem:[%s17 + $0x330] sm:$0xff]
      %v1907 = vld [vmem:[%s17 + $0x338] sm:$0xff]
      %v1908 = vld [vmem:[%s17 + $0x340] sm:$0xff]
      %v1909 = vld [vmem:[%s17 + $0x348] sm:$0xff]
      %v1910 = vld [vmem:[%s17 + $0x350] sm:$0xff]
      %v1911 = vld [vmem:[%s17 + $0x358] sm:$0xff]
      %v1912 = vld [vmem:[%s17 + $0x360] sm:$0xff]
      %v1913 = vld [vmem:[%s17 + $0x368] sm:$0xff]
      %v1914 = vld [vmem:[%s17 + $0x370] sm:$0xff]
      %v1915 = vld [vmem:[%s17 + $0x378] sm:$0xff]
      %v1916 = vld [vmem:[%s17 + $0x380] sm:$0xff]
      %v1917 = vld [vmem:[%s17 + $0x388] sm:$0xff]
      %v1918 = vld [vmem:[%s17 + $0x390] sm:$0xff]
      %v1919 = vld [vmem:[%s17 + $0x398] sm:$0xff]
      %v1920 = vld [vmem:[%s17 + $0x3a0] sm:$0xff]
      %v1921 = vld [vmem:[%s17 + $0x3a8] sm:$0xff]
      %v1922 = vld [vmem:[%s17 + $0x3b0] sm:$0xff]
      %v1923 = vld [vmem:[%s17 + $0x3b8] sm:$0xff]
      %v1924 = vld [vmem:[%s17 + $0x3c0] sm:$0xff]
      %v1925 = vld [vmem:[%s17 + $0x3c8] sm:$0xff]
      %v1926 = vld [vmem:[%s17 + $0x3d0] sm:$0xff]
      %v1927 = vld [vmem:[%s17 + $0x3d8] sm:$0xff]
      %v1928 = vld [vmem:[%s17 + $0x3e0] sm:$0xff]
      %v1929 = vld [vmem:[%s17 + $0x3e8] sm:$0xff]
      %v1930 = vld [vmem:[%s17 + $0x3f0] sm:$0xff]
      %v1931 = vld [vmem:[%s17 + $0x3f8] sm:$0xff]
      %1932 = vmatprep.subr.mxu0 %v1805
      %1933 = vmatpush1.msra.mxu0 %v1804
      %1934 = vmatprep.subr.mxu0 %v1807
      %1935 = vmatpush1.msra.mxu0 %v1806
      %1936 = vmatprep.subr.mxu0 %v1809
      %1937 = vmatpush1.msra.mxu0 %v1808
      %1938 = vmatprep.subr.mxu0 %v1811
      %1939 = vmatpush1.msra.mxu0 %v1810
      %1940 = vmatprep.subr.mxu0 %v1813
      %1941 = vmatpush1.msra.mxu0 %v1812
      %1942 = vmatprep.subr.mxu0 %v1815
      %1943 = vmatpush1.msra.mxu0 %v1814
      %1944 = vmatprep.subr.mxu0 %v1817
      %1945 = vmatpush1.msra.mxu0 %v1816
      %1946 = vmatprep.subr.mxu0 %v1819
      %1947 = vmatpush1.msra.mxu0 %v1818
      %1948 = vmatprep.subr.mxu0 %v1821
      %1949 = vmatpush1.msra.mxu0 %v1820
      %1950 = vmatprep.subr.mxu0 %v1823
      %1951 = vmatpush1.msra.mxu0 %v1822
      %1952 = vmatprep.subr.mxu0 %v1825
      %1953 = vmatpush1.msra.mxu0 %v1824
      %1954 = vmatprep.subr.mxu0 %v1827
      %1955 = vmatpush1.msra.mxu0 %v1826
      %1956 = vmatprep.subr.mxu0 %v1829
      %1957 = vmatpush1.msra.mxu0 %v1828
      %1958 = vmatprep.subr.mxu0 %v1831
      %1959 = vmatpush1.msra.mxu0 %v1830
      %1960 = vmatprep.subr.mxu0 %v1833
      %1961 = vmatpush1.msra.mxu0 %v1832
      %1962 = vmatprep.subr.mxu0 %v1835
      %1963 = vmatpush1.msra.mxu0 %v1834
      %1964 = vmatprep.subr.mxu0 %v1837
      %1965 = vmatpush1.msra.mxu0 %v1836
      %1966 = vmatprep.subr.mxu0 %v1839
      %1967 = vmatpush1.msra.mxu0 %v1838
      %1968 = vmatprep.subr.mxu0 %v1841
      %1969 = vmatpush1.msra.mxu0 %v1840
      %1970 = vmatprep.subr.mxu0 %v1843
      %1971 = vmatpush1.msra.mxu0 %v1842
      %1972 = vmatprep.subr.mxu0 %v1845
      %1973 = vmatpush1.msra.mxu0 %v1844
      %1974 = vmatprep.subr.mxu0 %v1847
      %1975 = vmatpush1.msra.mxu0 %v1846
      %1976 = vmatprep.subr.mxu0 %v1849
      %1977 = vmatpush1.msra.mxu0 %v1848
      %1978 = vmatprep.subr.mxu0 %v1851
      %1979 = vmatpush1.msra.mxu0 %v1850
      %1980 = vmatprep.subr.mxu0 %v1853
      %1981 = vmatpush1.msra.mxu0 %v1852
      %1982 = vmatprep.subr.mxu0 %v1855
      %1983 = vmatpush1.msra.mxu0 %v1854
      %1984 = vmatprep.subr.mxu0 %v1857
      %1985 = vmatpush1.msra.mxu0 %v1856
      %1986 = vmatprep.subr.mxu0 %v1859
      %1987 = vmatpush1.msra.mxu0 %v1858
      %1988 = vmatprep.subr.mxu0 %v1861
      %1989 = vmatpush1.msra.mxu0 %v1860
      %1990 = vmatprep.subr.mxu0 %v1863
      %1991 = vmatpush1.msra.mxu0 %v1862
      %1992 = vmatprep.subr.mxu0 %v1865
      %1993 = vmatpush1.msra.mxu0 %v1864
      %1994 = vmatprep.subr.mxu0 %v1867
      %1995 = vmatpush1.msra.mxu0 %v1866
      %1996 = vmatprep.mubr.f32.mxu0 %v1791
      %1997 = vmatmul.mubr.f32.gmra.mrb[0].mxu0 %v1790
      %v1998 = vpop.f32.mrb[0].mxu0
      %v1999 = vadd.f32 0.0, %v1998
      %v2000 = vpop.f32.mrb[0].mxu0
      %v2001 = vadd.f32 0.0, %v2000
      %2002 = vdwg.mxu0
      %2003 = vmatprep.subr.mxu0 %v1869
      %2004 = vmatpush1.msra.mxu0 %v1868
      %2005 = vmatprep.subr.mxu0 %v1871
      %2006 = vmatpush1.msra.mxu0 %v1870
      %2007 = vmatprep.subr.mxu0 %v1873
      %2008 = vmatpush1.msra.mxu0 %v1872
      %2009 = vmatprep.subr.mxu0 %v1875
      %2010 = vmatpush1.msra.mxu0 %v1874
      %2011 = vmatprep.subr.mxu0 %v1877
      %2012 = vmatpush1.msra.mxu0 %v1876
      %2013 = vmatprep.subr.mxu0 %v1879
      %2014 = vmatpush1.msra.mxu0 %v1878
      %2015 = vmatprep.subr.mxu0 %v1881
      %2016 = vmatpush1.msra.mxu0 %v1880
      %2017 = vmatprep.subr.mxu0 %v1883
      %2018 = vmatpush1.msra.mxu0 %v1882
      %2019 = vmatprep.subr.mxu0 %v1885
      %2020 = vmatpush1.msra.mxu0 %v1884
      %2021 = vmatprep.subr.mxu0 %v1887
      %2022 = vmatpush1.msra.mxu0 %v1886
      %2023 = vmatprep.subr.mxu0 %v1889
      %2024 = vmatpush1.msra.mxu0 %v1888
      %2025 = vmatprep.subr.mxu0 %v1891
      %2026 = vmatpush1.msra.mxu0 %v1890
      %2027 = vmatprep.subr.mxu0 %v1893
      %2028 = vmatpush1.msra.mxu0 %v1892
      %2029 = vmatprep.subr.mxu0 %v1895
      %2030 = vmatpush1.msra.mxu0 %v1894
      %2031 = vmatprep.subr.mxu0 %v1897
      %2032 = vmatpush1.msra.mxu0 %v1896
      %2033 = vmatprep.subr.mxu0 %v1899
      %2034 = vmatpush1.msra.mxu0 %v1898
      %2035 = vmatprep.subr.mxu0 %v1901
      %2036 = vmatpush1.msra.mxu0 %v1900
      %2037 = vmatprep.subr.mxu0 %v1903
      %2038 = vmatpush1.msra.mxu0 %v1902
      %2039 = vmatprep.subr.mxu0 %v1905
      %2040 = vmatpush1.msra.mxu0 %v1904
      %2041 = vmatprep.subr.mxu0 %v1907
      %2042 = vmatpush1.msra.mxu0 %v1906
      %2043 = vmatprep.subr.mxu0 %v1909
      %2044 = vmatpush1.msra.mxu0 %v1908
      %2045 = vmatprep.subr.mxu0 %v1911
      %2046 = vmatpush1.msra.mxu0 %v1910
      %2047 = vmatprep.subr.mxu0 %v1913
      %2048 = vmatpush1.msra.mxu0 %v1912
      %2049 = vmatprep.subr.mxu0 %v1915
      %2050 = vmatpush1.msra.mxu0 %v1914
      %2051 = vmatprep.subr.mxu0 %v1917
      %2052 = vmatpush1.msra.mxu0 %v1916
      %2053 = vmatprep.subr.mxu0 %v1919
      %2054 = vmatpush1.msra.mxu0 %v1918
      %2055 = vmatprep.subr.mxu0 %v1921
      %2056 = vmatpush1.msra.mxu0 %v1920
      %2057 = vmatprep.subr.mxu0 %v1923
      %2058 = vmatpush1.msra.mxu0 %v1922
      %2059 = vmatprep.subr.mxu0 %v1925
      %2060 = vmatpush1.msra.mxu0 %v1924
      %2061 = vmatprep.subr.mxu0 %v1927
      %2062 = vmatpush1.msra.mxu0 %v1926
      %2063 = vmatprep.subr.mxu0 %v1929
      %2064 = vmatpush1.msra.mxu0 %v1928
      %2065 = vmatprep.subr.mxu0 %v1931
      %2066 = vmatpush1.msra.mxu0 %v1930
      %2067 = vmatprep.mubr.f32.mxu0 %v1803
      %2068 = vmatmul.mubr.f32.gmra.mrb[0].mxu0 %v1797
      %v2069 = vpop.f32.mrb[0].mxu0
      %v2070 = vadd.f32 %v1999, %v2069
      %v2071 = vpop.f32.mrb[0].mxu0
      %v2072 = vadd.f32 %v2001, %v2071
      %2073 = vdwg.mxu0
      %2075 = vset.pattern.permute.xlu0 0
      %2076 = vperm.xlu0 %2075, %v1618
      %v2077 = vpop.permute.xlu0 %2076
      %v2079 = vadd.f32 %v1459, %v2077
      %v2080 = vadd.f32 %v1461, %v2077
      %2082 = vset.pattern.permute.xlu0 0
      %2083 = vperm.xlu0 %2082, %v1775
      %v2084 = vpop.permute.xlu0 %2083
      %v2086 = vadd.f32 %v2079, %v2084
      %v2087 = vadd.f32 %v2080, %v2084
      %v2088 = vlaneseq
      %v2089 = vshrl.u32 %v2088, 7
      %v2090 = vsub.s32 0, %v2089
      %v2091 = vrot.slane %v2070, %v2090
      %v2092 = vlaneseq
      %v2093 = vshrl.u32 %v2092, 7
      %v2094 = vsub.s32 0, %v2093
      %v2095 = vrot.slane %v2072, %v2094
      %v2096 = vadd.f32 %v2086, %v2091
      %v2097 = vadd.f32 %v2087, %v2095
      %v2098 = vxor.u32 %v2096, 2147483648
      %v2099 = vxor.u32 %v2097, 2147483648
      %v2100 = vmul.f32 %v2098, 1.442695
      %v2101 = vpow.pop %v2100
      %v2102 = vmul.f32 %v2099, 1.442695
      %v2103 = vpow.pop %v2102
      %v2104 = vadd.f32 %v2101, 1.0
      %v2105 = vadd.f32 %v2103, 1.0
      %v2106 = vrcp.pop %v2104
      %v2107 = vmul.f32 1.0, %v2106
      %v2108 = vrcp.pop %v2105
      %v2109 = vmul.f32 1.0, %v2108
      %v2110 = vmul.f32 %v1250, %v2107
      %v2111 = vmul.f32 %v1251, %v2109
      %v2112 = vsub.f32 1.0, %v2107
      %v2113 = vsub.f32 1.0, %v2109
      %v2114 = vmul.f32 %v1252, %v2112
      %v2115 = vmul.f32 %v1253, %v2113
      %v2116 = vadd.f32 %v2110, %v2114
      %v2117 = vadd.f32 %v2111, %v2115
      %2118 = vst [vmem:[%s595] sm:$0xff] %v2116
      %2119 = vst [vmem:[%s595 + $0x8] sm:$0xff] %v2117
      %p2120 = scmp.lt.s32.totalorder %s29, 1
      %s2121 = scalar_select %p2120, %s29, 1
      %s2122 = smul.addr %s2121, 2
      %s2123 = smul.addr %s2122, 8
      %s2124 = scalar_lea.vmem %s18, %s2123
      // Predicated region
      $region93: #{acfm_forward.1} parent=91 // pred_check
        %p2125 = pneg %p435
      $region94: #{acfm_forward.1} parent=91 // pred_check_branch
        %2127 = sbr.rel (%p2125) target = $region96
      $region95: #{acfm_forward.1} parent=91 // pred_region
        _
      $region96: #{acfm_forward.1} parent=91 // pred_fallthru
        _
    $region92: #{acfm_forward.1} parent=5 // pred_fallthru
      _
    %p2128 = scmp.le.s32.totalorder 2, %s24
    // Predicated region
    $region97: #{acfm_forward.1} parent=5 // pred_check
      %p2129 = pneg %p2128
    $region98: #{acfm_forward.1} parent=5 // pred_check_branch
      %2131 = sbr.rel (%p2129) target = $region100
    $region99: #{acfm_forward.1} parent=5 // pred_region
      %s2132 = ssub.s32 %s24, 2
      // Predicated region
      $region101: #{acfm_forward.1} parent=99 // pred_check
        %p2133 = pneg %p441
      $region102: #{acfm_forward.1} parent=99 // pred_check_branch
        %2135 = sbr.rel (%p2133) target = $region104
      $region103: #{acfm_forward.1} parent=99 // pred_region
        %p2136 = scmp.lt.s32.totalorder %s30, 1
        %s2137 = scalar_select %p2136, %s30, 1
        %s2138 = smul.addr %s2137, 2
        %s2139 = smul.addr %s2138, 8
        %s2140 = scalar_lea.vmem %s18, %s2139
      $region104: #{acfm_forward.1} parent=99 // pred_fallthru
        _
    $region100: #{acfm_forward.1} parent=5 // pred_fallthru
      _
  $region6: #{acfm_forward.1} parent=0 // loop_footer
    %s28 = sadd.s32 1, %s24
  $region7: #{acfm_forward.1} parent=0 // loop_footer_branch
    %23 = sbr.rel target = $region3
  $region8: #{acfm_forward.1} parent=0 // loop_exit
    _

</llo_original>
